<compile_context>
chip_gen: v5e
topology: v5e:2x2
jax: 0.10.0
libtpu: 0.0.40
codegen_flags: <defaults>
</compile_context>

<pallas_src>
import functools
import math

import jax
import jax.numpy as jnp
from jax import lax
from jax.experimental import pallas as pl
from jax.experimental.pallas import tpu as pltpu


def _gelu_exact(x):
    # Matches torch.nn.GELU() default (approximate='none'): 0.5*x*(1+erf(x/sqrt(2)))
    return 0.5 * x * (1.0 + lax.erf(x * (1.0 / math.sqrt(2.0))))


# ---------------------------------------------------------------------------
# Kernels
# ---------------------------------------------------------------------------

def _se_single_pass_kernel(x_ref, w1_ref, w2_ref, o_ref, *, inv_hw):
    """One grid step: pool + excite + scale for `bt` batch elements."""
    # Squeeze: f32 accumulation over the lane-dense spatial axis; divide by the
    # *true* H*W so any lane zero-padding is exact.
    y = jnp.sum(x_ref[...], axis=-1, dtype=jnp.float32) * inv_hw          # (bt, C)
    # Excitation: Linear -> GELU -> Linear -> Sigmoid (tiny; hidden under DMA).
    h = _gelu_exact(jnp.dot(y, w1_ref[...], preferred_element_type=jnp.float32))
    s = jax.nn.sigmoid(jnp.dot(h, w2_ref[...], preferred_element_type=jnp.float32))
    # Scale in the input dtype (lean store; halves writeback bytes for bf16).
    o_ref[...] = x_ref[...] * s.astype(o_ref.dtype)[:, :, None]


def _pool_excite_kernel(x_ref, w1_ref, w2_ref, s_ref, acc_ref, *, inv_hw):
    """Two-pass fallback, pass A: spatially tiled pool + tiny excitation."""
    t = pl.program_id(1)

    @pl.when(t == 0)
    def _():
        acc_ref[...] = jnp.zeros_like(acc_ref)

    acc_ref[...] += jnp.sum(x_ref[...], axis=-1, dtype=jnp.float32)

    @pl.when(t == pl.num_programs(1) - 1)
    def _():
        y = acc_ref[...] * inv_hw                                         # (bt, C)
        h = _gelu_exact(jnp.dot(y, w1_ref[...], preferred_element_type=jnp.float32))
        s = jax.nn.sigmoid(jnp.dot(h, w2_ref[...], preferred_element_type=jnp.float32))
        s_ref[...] = s.astype(s_ref.dtype)


def _scale_kernel(s_ref, x_ref, o_ref):
    """Two-pass fallback, pass B: out = x * s (s resident across spatial tiles)."""
    o_ref[...] = x_ref[...] * s_ref[...].astype(o_ref.dtype)[:, :, None]


# ---------------------------------------------------------------------------
# Wrapper / tiling heuristics
# ---------------------------------------------------------------------------

def _chip_info():
    """(tensorcores_per_chip, physical VMEM bytes per TensorCore), heuristically."""
    try:
        kind = jax.devices()[0].device_kind.lower()
    except Exception:
        kind = ""
    if "v7" in kind or "7x" in kind:
        return 2, 64 << 20           # v7x: 2 TCs, 64 MiB VMEM per TC
    return 1, 128 << 20              # v5e / v6e (and a safe default): 1 TC, 128 MiB


def _pick_block_batch(B, per_item_bytes, budget, num_cores, sublane_align=1):
    """Largest divisor bt of B such that one block stays under `budget` bytes.

    On multi-TensorCore chips (v7x) the grid is kept an even multiple of the
    core count; on single-core chips bt == B (grid of 1) is allowed.
    `sublane_align`: prefer bt that is a multiple of this (or == B) so 2-D
    (bt, C) blocks stay sublane-aligned."""
    max_bt = max(1, budget // max(per_item_bytes, 1))
    best = 1
    best_aligned = None
    for cand in range(1, B + 1):
        if B % cand or cand > max_bt:
            continue
        steps = B // cand
        if num_cores > 1 and B > 1 and steps % num_cores != 0:
            continue
        best = cand
        if cand % sublane_align == 0 or cand == B:
            best_aligned = cand
    return best_aligned if best_aligned is not None else best


def _pick_spatial_tile(HW_pad, C, itemsize, budget):
    """Largest multiple of 128 that divides HW_pad and fits the block budget."""
    best = 128
    t = 128
    while t <= HW_pad:
        if HW_pad % t == 0 and C * t * itemsize <= budget:
            best = t
        t += 128
    return best


def _weight_spec(shape, index_map, nbytes):
    if nbytes >= (1 << 20):
        # Grid-invariant weights: a single buffer (no double-buffering) so large
        # production weights don't steal VMEM from the x/out blocks (v7x: 64 MiB).
        return pl.BlockSpec(shape, index_map, pipeline_mode=pl.Buffered(1))
    return pl.BlockSpec(shape, index_map)


def se_forward(x, w1, w2, *, block_batch=None, force_two_pass=False, spatial_tile=None):
    """x: (B, C, H, W); w1: (C, hidden); w2: (hidden, C). Returns (B, C, H, W)."""
    B, C, H, W = x.shape
    HW = H * W
    hidden = w1.shape[1]
    itemsize = int(x.dtype.itemsize)

    num_cores, phys_vmem = _chip_info()
    vmem_limit = int(min(phys_vmem - (16 << 20), 96 << 20))      # 48 MiB v7x, 96 MiB v5e/v6e
    w1_bytes = int(w1.size * w1.dtype.itemsize)
    w2_bytes = int(w2.size * w2.dtype.itemsize)
    w_bytes = w1_bytes + w2_bytes
    # Input + output each double-buffered => ~4 live blocks, plus weight buffers.
    block_budget = int(max(1 << 20, min((vmem_limit - 2 * w_bytes) // 4, 12 << 20)))

    # Lane-dense view: collapse spatial onto the lane axis; pad to a multiple of
    # 128 so stores are full vregs (the pool divides by the true HW, so exact).
    x2 = x.reshape(B, C, HW)
    pad = (-HW) % 128
    HW_pad = HW + pad
    if pad:
        x2 = jnp.pad(x2, ((0, 0), (0, 0), (0, pad)))

    per_batch_bytes = C * HW_pad * itemsize
    inv_hw = 1.0 / float(HW)

    if per_batch_bytes <= block_budget and not force_two_pass:
        # -------- single pass: read x once, write once --------
        bt = block_batch if block_batch is not None else _pick_block_batch(
            B, per_batch_bytes, block_budget, num_cores)
        assert B % bt == 0, "block_batch must divide B"

        cost = pl.CostEstimate(
            flops=int(4 * B * C * hidden + 2 * B * C * HW),
            transcendentals=int(B * hidden + B * C),
            bytes_accessed=int(2 * B * C * HW_pad * itemsize + w_bytes),
        )
        out = pl.pallas_call(
            functools.partial(_se_single_pass_kernel, inv_hw=inv_hw),
            out_shape=jax.ShapeDtypeStruct((B, C, HW_pad), x.dtype),
            grid_spec=pltpu.PrefetchScalarGridSpec(
                num_scalar_prefetch=0,
                grid=(B // bt,),
                in_specs=[
                    pl.BlockSpec((bt, C, HW_pad), lambda b: (b, 0, 0)),
                    _weight_spec((C, hidden), lambda b: (0, 0), w1_bytes),
                    _weight_spec((hidden, C), lambda b: (0, 0), w2_bytes),
                ],
                out_specs=pl.BlockSpec((bt, C, HW_pad), lambda b: (b, 0, 0)),
            ),
            compiler_params=pltpu.CompilerParams(
                dimension_semantics=("parallel",),
                vmem_limit_bytes=vmem_limit,
            ),
            cost_estimate=cost,
        )(x2, w1, w2)
    else:
        # -------- two-pass fallback: block exceeds the VMEM budget --------
        hwt = spatial_tile if spatial_tile is not None else _pick_spatial_tile(
            HW_pad, C, itemsize, block_budget)
        assert HW_pad % hwt == 0 and hwt % 128 == 0
        bt = block_batch if block_batch is not None else _pick_block_batch(
            B, C * hwt * itemsize, block_budget, num_cores, sublane_align=8)
        assert B % bt == 0
        n_sp = HW_pad // hwt

        # Pass A: spatially tiled pool (f32 accumulator) + tiny excitation.
        cost_a = pl.CostEstimate(
            flops=int(4 * B * C * hidden + B * C * HW),
            transcendentals=int(B * hidden + B * C),
            bytes_accessed=int(B * C * HW_pad * itemsize + w_bytes + B * C * 4),
        )
        scale = pl.pallas_call(
            functools.partial(_pool_excite_kernel, inv_hw=inv_hw),
            out_shape=jax.ShapeDtypeStruct((B, C), jnp.float32),
            grid_spec=pltpu.PrefetchScalarGridSpec(
                num_scalar_prefetch=0,
                grid=(B // bt, n_sp),
                in_specs=[
                    pl.BlockSpec((bt, C, hwt), lambda b, t: (b, 0, t)),
                    _weight_spec((C, hidden), lambda b, t: (0, 0), w1_bytes),
                    _weight_spec((hidden, C), lambda b, t: (0, 0), w2_bytes),
                ],
                out_specs=pl.BlockSpec((bt, C), lambda b, t: (b, 0)),
                scratch_shapes=[pltpu.VMEM((bt, C), jnp.float32)],
            ),
            compiler_params=pltpu.CompilerParams(
                dimension_semantics=("parallel", "arbitrary"),
                vmem_limit_bytes=vmem_limit,
            ),
            cost_estimate=cost_a,
        )(x2, w1, w2)

        # Pass B: out = x * s, spatially tiled; s stays resident per batch block.
        cost_b = pl.CostEstimate(
            flops=int(B * C * HW),
            transcendentals=0,
            bytes_accessed=int(2 * B * C * HW_pad * itemsize + B * C * 4),
        )
        out = pl.pallas_call(
            _scale_kernel,
            out_shape=jax.ShapeDtypeStruct((B, C, HW_pad), x.dtype),
            grid_spec=pltpu.PrefetchScalarGridSpec(
                num_scalar_prefetch=0,
                grid=(B // bt, n_sp),
                in_specs=[
                    pl.BlockSpec((bt, C), lambda b, t: (b, 0)),
                    pl.BlockSpec((bt, C, hwt), lambda b, t: (b, 0, t)),
                ],
                out_specs=pl.BlockSpec((bt, C, hwt), lambda b, t: (b, 0, t)),
            ),
            compiler_params=pltpu.CompilerParams(
                dimension_semantics=("parallel", "parallel"),
                vmem_limit_bytes=vmem_limit,
            ),
            cost_estimate=cost_b,
        )(scale, x2)

    if pad:
        out = out[..., :HW]
    return out.reshape(B, C, H, W)


def se_reference(x, w1, w2):
    """Pure-JAX reference (same math as the PyTorch module)."""
    y = jnp.mean(x, axis=(2, 3))                   # (B, C)
    h = _gelu_exact(y @ w1)                        # (B, hidden)
    s = jax.nn.sigmoid(h @ w2)                     # (B, C)
    return x * s[:, :, None, None]


if __name__ == "__main__":
    # Module hyperparameters: SE(inp, oup, expansion=0.25); x has oup channels.
    inp = 32
    oup = 32
    expansion = 0.25
    hidden = int(inp * expansion)                  # 8

    B, C, H, W = 16, oup, 16, 16

    key = jax.random.PRNGKey(0)
    kx, k1, k2 = jax.random.split(key, 3)

    x = jax.random.normal(kx, (B, C, H, W), dtype=jnp.float32)
    # nn.Linear(oup, hidden, bias=False).weight has shape (hidden, oup); we store
    # the transposed matrices so the kernel computes y @ w1 / h @ w2 directly.
    w1 = jax.random.normal(k1, (C, hidden), dtype=jnp.float32) * (1.0 / math.sqrt(C))
    w2 = jax.random.normal(k2, (hidden, C), dtype=jnp.float32) * (1.0 / math.sqrt(hidden))

    ref = jax.block_until_ready(se_reference(x, w1, w2))

    # 1) Default single-pass path (read-once / write-once).
    out = jax.block_until_ready(se_forward(x, w1, w2))
    assert out.shape == (B, C, H, W)
    assert jnp.allclose(out, ref, atol=1e-5, rtol=1e-5), "single-pass mismatch"

    # 2) Two-pass fallback (the path production v7x-sized blocks would take).
    out2 = jax.block_until_ready(
        se_forward(x, w1, w2, force_two_pass=True, spatial_tile=128))
    assert jnp.allclose(out2, ref, atol=1e-5, rtol=1e-5), "two-pass mismatch"

    # 3) Non-128-aligned spatial (7x7 head) exercises the lane-padding guard.
    xs = jax.random.normal(kx, (4, C, 7, 7), dtype=jnp.float32)
    refs = jax.block_until_ready(se_reference(xs, w1, w2))
    outs = jax.block_until_ready(se_forward(xs, w1, w2))
    assert jnp.allclose(outs, refs, atol=1e-5, rtol=1e-5), "padded-spatial mismatch"

    print("KERNEL_OK")
</pallas_src>

<mosaic_0001>
module attributes {stable_mosaic.version = 11 : i64} {
  func.func @_se_single_pass_kernel(%arg0: i32, %arg1: memref<16x32x256xf32, #tpu.memory_space<vmem>>, %arg2: memref<32x8xf32, #tpu.memory_space<vmem>>, %arg3: memref<8x32xf32, #tpu.memory_space<vmem>>, %arg4: memref<16x32x256xf32, #tpu.memory_space<vmem>>) attributes {dimension_semantics = [#tpu.dimension_semantics<parallel>], iteration_bounds = array<i64: 1>, scalar_prefetch = 0 : i64, scratch_operands = 0 : i64, tpu.core_type = #tpu.core_type<tc>, window_params = [{transform_indices = @transform_0, window_bounds = array<i64: 16, 32, 256>}, {pipeline_mode = #tpu.pipeline_mode<synchronous>, transform_indices = @transform_1, window_bounds = array<i64: 32, 8>}, {pipeline_mode = #tpu.pipeline_mode<synchronous>, transform_indices = @transform_2, window_bounds = array<i64: 8, 32>}, {transform_indices = @transform_3, window_bounds = array<i64: 16, 32, 256>}]} {
    %c0 = arith.constant 0 : index
    %c0_0 = arith.constant 0 : index
    %c0_1 = arith.constant 0 : index
    %0 = vector.load %arg1[%c0, %c0_0, %c0_1] : memref<16x32x256xf32, #tpu.memory_space<vmem>>, vector<16x32x256xf32>
    %cst = arith.constant dense<0.000000e+00> : vector<16x32xf32>
    %1 = vector.multi_reduction <add>, %0, %cst [2] : vector<16x32x256xf32> to vector<16x32xf32>
    %cst_2 = arith.constant 3.906250e-03 : f32
    %2 = vector.broadcast %cst_2 : f32 to vector<16x32xf32>
    %3 = arith.mulf %1, %2 : vector<16x32xf32>
    %c0_3 = arith.constant 0 : index
    %c0_4 = arith.constant 0 : index
    %4 = vector.load %arg2[%c0_3, %c0_4] : memref<32x8xf32, #tpu.memory_space<vmem>>, vector<32x8xf32>
    %cst_5 = arith.constant dense<0.000000e+00> : vector<16x8xf32>
    %5 = tpu.matmul %3, %4, %cst_5 {dimension_numbers = #tpu.dot_dimension_numbers<[1], [0], [0], [1], [0, 0, 1, 1], [], []>} : vector<16x32xf32>, vector<32x8xf32>, vector<16x8xf32> -> vector<16x8xf32>
    %cst_6 = arith.constant 5.000000e-01 : f32
    %6 = vector.broadcast %cst_6 : f32 to vector<16x8xf32>
    %7 = arith.mulf %6, %5 : vector<16x8xf32>
    %cst_7 = arith.constant 0.707106769 : f32
    %8 = vector.broadcast %cst_7 : f32 to vector<16x8xf32>
    %9 = arith.mulf %5, %8 : vector<16x8xf32>
    %10 = math.erf %9 : vector<16x8xf32>
    %cst_8 = arith.constant 1.000000e+00 : f32
    %11 = vector.broadcast %cst_8 : f32 to vector<16x8xf32>
    %12 = arith.addf %11, %10 : vector<16x8xf32>
    %13 = arith.mulf %7, %12 : vector<16x8xf32>
    %c0_9 = arith.constant 0 : index
    %c0_10 = arith.constant 0 : index
    %14 = vector.load %arg3[%c0_9, %c0_10] : memref<8x32xf32, #tpu.memory_space<vmem>>, vector<8x32xf32>
    %cst_11 = arith.constant dense<0.000000e+00> : vector<16x32xf32>
    %15 = tpu.matmul %13, %14, %cst_11 {dimension_numbers = #tpu.dot_dimension_numbers<[1], [0], [0], [1], [0, 0, 1, 1], [], []>} : vector<16x8xf32>, vector<8x32xf32>, vector<16x32xf32> -> vector<16x32xf32>
    %16 = arith.negf %15 : vector<16x32xf32>
    %17 = math.exp %16 : vector<16x32xf32>
    %cst_12 = arith.constant 1.000000e+00 : f32
    %18 = vector.broadcast %cst_12 : f32 to vector<16x32xf32>
    %19 = arith.addf %18, %17 : vector<16x32xf32>
    %20 = arith.divf %18, %19 : vector<16x32xf32>
    %c0_13 = arith.constant 0 : index
    %c0_14 = arith.constant 0 : index
    %c0_15 = arith.constant 0 : index
    %21 = vector.load %arg1[%c0_13, %c0_14, %c0_15] : memref<16x32x256xf32, #tpu.memory_space<vmem>>, vector<16x32x256xf32>
    %22 = vector.shape_cast %20 : vector<16x32xf32> to vector<16x32x1xf32>
    %23 = vector.broadcast %22 : vector<16x32x1xf32> to vector<16x32x256xf32>
    %24 = arith.mulf %21, %23 : vector<16x32x256xf32>
    %c0_16 = arith.constant 0 : index
    %c0_17 = arith.constant 0 : index
    %c0_18 = arith.constant 0 : index
    %25 = vector.load %arg4[%c0_16, %c0_17, %c0_18] : memref<16x32x256xf32, #tpu.memory_space<vmem>>, vector<16x32x256xf32>
    tpu.vector_store %arg4[%c0_16, %c0_17, %c0_18], %24 {strides = array<i32>} : memref<16x32x256xf32, #tpu.memory_space<vmem>>, vector<16x32x256xf32>,
    return
  }
  func.func @transform_0(%arg0: i32) -> (i32, i32, i32) {
    %c0_i32 = arith.constant 0 : i32
    %c0_i32_0 = arith.constant 0 : i32
    %c0_i32_1 = arith.constant 0 : i32
    return %arg0, %c0_i32, %c0_i32_0 : i32, i32, i32
  }
  func.func @transform_1(%arg0: i32) -> (i32, i32) {
    %c0_i32 = arith.constant 0 : i32
    %c0_i32_0 = arith.constant 0 : i32
    %c0_i32_1 = arith.constant 0 : i32
    return %c0_i32, %c0_i32_0 : i32, i32
  }
  func.func @transform_2(%arg0: i32) -> (i32, i32) {
    %c0_i32 = arith.constant 0 : i32
    %c0_i32_0 = arith.constant 0 : i32
    %c0_i32_1 = arith.constant 0 : i32
    return %c0_i32, %c0_i32_0 : i32, i32
  }
  func.func @transform_3(%arg0: i32) -> (i32, i32, i32) {
    %c0_i32 = arith.constant 0 : i32
    %c0_i32_0 = arith.constant 0 : i32
    %c0_i32_1 = arith.constant 0 : i32
    return %arg0, %c0_i32, %c0_i32_0 : i32, i32, i32
  }
}

</mosaic_0001>

<llo_original>
// kernel: tpu_custom_call.1
$region0: #{tpu_custom_call.1}
  #allocation0 [shape = 'u32[]', space=smem, size = 0x4, offset = 0x4, fixed_abs, tag = 'smem constant byte address 0x4 - core index']
  #allocation1 [shape = 'u32[72,128]{1,0:T(1,128)}', space=vmem, size = 0x9000, scoped, tag = 'internal scratch']
  %s0 = inlined_call_operand.hbm [shape: f32[16,32,256], index: 0, kind: input, shape index: {}]
  %s1 = inlined_call_operand.vmem [shape: f32[32,8], index: 1, kind: input, shape index: {}]
  %s2 = inlined_call_operand.vmem [shape: f32[8,32], index: 2, kind: input, shape index: {}]
  %s3 = inlined_call_operand.hbm [shape: f32[16,32,256], index: 3, kind: output, shape index: {}]
  %s4 = sld [smem:[#allocation0]]
  $region26: #{tpu_custom_call.1} parent=0
    _
  %s6 = ssub.s32 1, %s4
  %s7 = scalar_select 0, %s6, %s4
  $region1: #{tpu_custom_call.1} parent=0
    #allocation2 [shape = 'u8[524288]{0}', space=vmem, size = 0x80000, scoped, tag = 'input window, operand 0, single buffered']
    #allocation3 [shape = 's32[1]{0}', space=sflag, size = 0x4, scoped, tag = 'scoped memory for tpu_custom_call.1']
    #allocation4 [shape = 's32[1]{0}', space=sflag, size = 0x4, scoped, tag = 'scoped memory for tpu_custom_call.1']
    #allocation5 [shape = 'u8[524288]{0}', space=vmem, size = 0x80000, scoped, tag = 'output window, operand 0, single buffered']
    %8 = vsyncpa [#allocation3], 0
    %9 = vsyncpa [#allocation4], 0
    // Predicated region
    $region2: #{tpu_custom_call.1} parent=1 // pred_check
      _
    $region3: #{tpu_custom_call.1} parent=1 // pred_check_branch
      %11 = sbr.rel (0) target = $region5
    $region4: #{tpu_custom_call.1} parent=1 // pred_region
      %13 = vsyncadd [#allocation3], 0
      %s14 = sshll.u32 %s0, 4
      %s15 = int_to_ptr.hbm [resolvable:$true] %s14
      %s16 = sshll.u32 [#allocation2], 4
      %s17 = int_to_ptr.vmem [resolvable:$true] %s16
      %22 = dma.hbm_to_vmem [thread:$0]  %s15, 16384, %s17, [#allocation3], 256, 256, 16
    $region5: #{tpu_custom_call.1} parent=1 // pred_fallthru
      _
    // Predicated region
    $region6: #{tpu_custom_call.1} parent=1 // pred_check
      _
    $region7: #{tpu_custom_call.1} parent=1 // pred_check_branch
      %24 = sbr.rel (0) target = $region9
    $region8: #{tpu_custom_call.1} parent=1 // pred_region
      _
    $region9: #{tpu_custom_call.1} parent=1 // pred_fallthru
      _
    // Predicated region
    $region10: #{tpu_custom_call.1} parent=1 // pred_check
      _
    $region11: #{tpu_custom_call.1} parent=1 // pred_check_branch
      %26 = sbr.rel (0) target = $region13
    $region12: #{tpu_custom_call.1} parent=1 // pred_region
      _
    $region13: #{tpu_custom_call.1} parent=1 // pred_fallthru
      _
    // Predicated region
    $region14: #{tpu_custom_call.1} parent=1 // pred_check
      _
    $region15: #{tpu_custom_call.1} parent=1 // pred_check_branch
      %28 = sbr.rel (0) target = $region17
    $region16: #{tpu_custom_call.1} parent=1 // pred_region
      %30 = dma.done [#allocation3], 16384
    $region17: #{tpu_custom_call.1} parent=1 // pred_fallthru
      _
    %v31 = vld [vmem:[#allocation2] sm:$0xff]
    %v32 = vld [vmem:[#allocation2 + $0x8] sm:$0xff]
    %v33 = vld [vmem:[#allocation2 + $0x10] sm:$0xff]
    %v34 = vld [vmem:[#allocation2 + $0x18] sm:$0xff]
    %v35 = vld [vmem:[#allocation2 + $0x20] sm:$0xff]
    %v36 = vld [vmem:[#allocation2 + $0x28] sm:$0xff]
    %v37 = vld [vmem:[#allocation2 + $0x30] sm:$0xff]
    %v38 = vld [vmem:[#allocation2 + $0x38] sm:$0xff]
    %v39 = vld [vmem:[#allocation2 + $0x40] sm:$0xff]
    %v40 = vld [vmem:[#allocation2 + $0x48] sm:$0xff]
    %v41 = vld [vmem:[#allocation2 + $0x50] sm:$0xff]
    %v42 = vld [vmem:[#allocation2 + $0x58] sm:$0xff]
    %v43 = vld [vmem:[#allocation2 + $0x60] sm:$0xff]
    %v44 = vld [vmem:[#allocation2 + $0x68] sm:$0xff]
    %v45 = vld [vmem:[#allocation2 + $0x70] sm:$0xff]
    %v46 = vld [vmem:[#allocation2 + $0x78] sm:$0xff]
    %v47 = vld [vmem:[#allocation2 + $0x80] sm:$0xff]
    %v48 = vld [vmem:[#allocation2 + $0x88] sm:$0xff]
    %v49 = vld [vmem:[#allocation2 + $0x90] sm:$0xff]
    %v50 = vld [vmem:[#allocation2 + $0x98] sm:$0xff]
    %v51 = vld [vmem:[#allocation2 + $0xa0] sm:$0xff]
    %v52 = vld [vmem:[#allocation2 + $0xa8] sm:$0xff]
    %v53 = vld [vmem:[#allocation2 + $0xb0] sm:$0xff]
    %v54 = vld [vmem:[#allocation2 + $0xb8] sm:$0xff]
    %v55 = vld [vmem:[#allocation2 + $0xc0] sm:$0xff]
    %v56 = vld [vmem:[#allocation2 + $0xc8] sm:$0xff]
    %v57 = vld [vmem:[#allocation2 + $0xd0] sm:$0xff]
    %v58 = vld [vmem:[#allocation2 + $0xd8] sm:$0xff]
    %v59 = vld [vmem:[#allocation2 + $0xe0] sm:$0xff]
    %v60 = vld [vmem:[#allocation2 + $0xe8] sm:$0xff]
    %v61 = vld [vmem:[#allocation2 + $0xf0] sm:$0xff]
    %v62 = vld [vmem:[#allocation2 + $0xf8] sm:$0xff]
    %v63 = vld [vmem:[#allocation2 + $0x100] sm:$0xff]
    %v64 = vld [vmem:[#allocation2 + $0x108] sm:$0xff]
    %v65 = vld [vmem:[#allocation2 + $0x110] sm:$0xff]
    %v66 = vld [vmem:[#allocation2 + $0x118] sm:$0xff]
    %v67 = vld [vmem:[#allocation2 + $0x120] sm:$0xff]
    %v68 = vld [vmem:[#allocation2 + $0x128] sm:$0xff]
    %v69 = vld [vmem:[#allocation2 + $0x130] sm:$0xff]
    %v70 = vld [vmem:[#allocation2 + $0x138] sm:$0xff]
    %v71 = vld [vmem:[#allocation2 + $0x140] sm:$0xff]
    %v72 = vld [vmem:[#allocation2 + $0x148] sm:$0xff]
    %v73 = vld [vmem:[#allocation2 + $0x150] sm:$0xff]
    %v74 = vld [vmem:[#allocation2 + $0x158] sm:$0xff]
    %v75 = vld [vmem:[#allocation2 + $0x160] sm:$0xff]
    %v76 = vld [vmem:[#allocation2 + $0x168] sm:$0xff]
    %v77 = vld [vmem:[#allocation2 + $0x170] sm:$0xff]
    %v78 = vld [vmem:[#allocation2 + $0x178] sm:$0xff]
    %v79 = vld [vmem:[#allocation2 + $0x180] sm:$0xff]
    %v80 = vld [vmem:[#allocation2 + $0x188] sm:$0xff]
    %v81 = vld [vmem:[#allocation2 + $0x190] sm:$0xff]
    %v82 = vld [vmem:[#allocation2 + $0x198] sm:$0xff]
    %v83 = vld [vmem:[#allocation2 + $0x1a0] sm:$0xff]
    %v84 = vld [vmem:[#allocation2 + $0x1a8] sm:$0xff]
    %v85 = vld [vmem:[#allocation2 + $0x1b0] sm:$0xff]
    %v86 = vld [vmem:[#allocation2 + $0x1b8] sm:$0xff]
    %v87 = vld [vmem:[#allocation2 + $0x1c0] sm:$0xff]
    %v88 = vld [vmem:[#allocation2 + $0x1c8] sm:$0xff]
    %v89 = vld [vmem:[#allocation2 + $0x1d0] sm:$0xff]
    %v90 = vld [vmem:[#allocation2 + $0x1d8] sm:$0xff]
    %v91 = vld [vmem:[#allocation2 + $0x1e0] sm:$0xff]
    %v92 = vld [vmem:[#allocation2 + $0x1e8] sm:$0xff]
    %v93 = vld [vmem:[#allocation2 + $0x1f0] sm:$0xff]
    %v94 = vld [vmem:[#allocation2 + $0x1f8] sm:$0xff]
    %v95 = vld [vmem:[#allocation2 + $0x200] sm:$0xff]
    %v96 = vld [vmem:[#allocation2 + $0x208] sm:$0xff]
    %v97 = vld [vmem:[#allocation2 + $0x210] sm:$0xff]
    %v98 = vld [vmem:[#allocation2 + $0x218] sm:$0xff]
    %v99 = vld [vmem:[#allocation2 + $0x220] sm:$0xff]
    %v100 = vld [vmem:[#allocation2 + $0x228] sm:$0xff]
    %v101 = vld [vmem:[#allocation2 + $0x230] sm:$0xff]
    %v102 = vld [vmem:[#allocation2 + $0x238] sm:$0xff]
    %v103 = vld [vmem:[#allocation2 + $0x240] sm:$0xff]
    %v104 = vld [vmem:[#allocation2 + $0x248] sm:$0xff]
    %v105 = vld [vmem:[#allocation2 + $0x250] sm:$0xff]
    %v106 = vld [vmem:[#allocation2 + $0x258] sm:$0xff]
    %v107 = vld [vmem:[#allocation2 + $0x260] sm:$0xff]
    %v108 = vld [vmem:[#allocation2 + $0x268] sm:$0xff]
    %v109 = vld [vmem:[#allocation2 + $0x270] sm:$0xff]
    %v110 = vld [vmem:[#allocation2 + $0x278] sm:$0xff]
    %v111 = vld [vmem:[#allocation2 + $0x280] sm:$0xff]
    %v112 = vld [vmem:[#allocation2 + $0x288] sm:$0xff]
    %v113 = vld [vmem:[#allocation2 + $0x290] sm:$0xff]
    %v114 = vld [vmem:[#allocation2 + $0x298] sm:$0xff]
    %v115 = vld [vmem:[#allocation2 + $0x2a0] sm:$0xff]
    %v116 = vld [vmem:[#allocation2 + $0x2a8] sm:$0xff]
    %v117 = vld [vmem:[#allocation2 + $0x2b0] sm:$0xff]
    %v118 = vld [vmem:[#allocation2 + $0x2b8] sm:$0xff]
    %v119 = vld [vmem:[#allocation2 + $0x2c0] sm:$0xff]
    %v120 = vld [vmem:[#allocation2 + $0x2c8] sm:$0xff]
    %v121 = vld [vmem:[#allocation2 + $0x2d0] sm:$0xff]
    %v122 = vld [vmem:[#allocation2 + $0x2d8] sm:$0xff]
    %v123 = vld [vmem:[#allocation2 + $0x2e0] sm:$0xff]
    %v124 = vld [vmem:[#allocation2 + $0x2e8] sm:$0xff]
    %v125 = vld [vmem:[#allocation2 + $0x2f0] sm:$0xff]
    %v126 = vld [vmem:[#allocation2 + $0x2f8] sm:$0xff]
    %v127 = vld [vmem:[#allocation2 + $0x300] sm:$0xff]
    %v128 = vld [vmem:[#allocation2 + $0x308] sm:$0xff]
    %v129 = vld [vmem:[#allocation2 + $0x310] sm:$0xff]
    %v130 = vld [vmem:[#allocation2 + $0x318] sm:$0xff]
    %v131 = vld [vmem:[#allocation2 + $0x320] sm:$0xff]
    %v132 = vld [vmem:[#allocation2 + $0x328] sm:$0xff]
    %v133 = vld [vmem:[#allocation2 + $0x330] sm:$0xff]
    %v134 = vld [vmem:[#allocation2 + $0x338] sm:$0xff]
    %v135 = vld [vmem:[#allocation2 + $0x340] sm:$0xff]
    %v136 = vld [vmem:[#allocation2 + $0x348] sm:$0xff]
    %v137 = vld [vmem:[#allocation2 + $0x350] sm:$0xff]
    %v138 = vld [vmem:[#allocation2 + $0x358] sm:$0xff]
    %v139 = vld [vmem:[#allocation2 + $0x360] sm:$0xff]
    %v140 = vld [vmem:[#allocation2 + $0x368] sm:$0xff]
    %v141 = vld [vmem:[#allocation2 + $0x370] sm:$0xff]
    %v142 = vld [vmem:[#allocation2 + $0x378] sm:$0xff]
    %v143 = vld [vmem:[#allocation2 + $0x380] sm:$0xff]
    %v144 = vld [vmem:[#allocation2 + $0x388] sm:$0xff]
    %v145 = vld [vmem:[#allocation2 + $0x390] sm:$0xff]
    %v146 = vld [vmem:[#allocation2 + $0x398] sm:$0xff]
    %v147 = vld [vmem:[#allocation2 + $0x3a0] sm:$0xff]
    %v148 = vld [vmem:[#allocation2 + $0x3a8] sm:$0xff]
    %v149 = vld [vmem:[#allocation2 + $0x3b0] sm:$0xff]
    %v150 = vld [vmem:[#allocation2 + $0x3b8] sm:$0xff]
    %v151 = vld [vmem:[#allocation2 + $0x3c0] sm:$0xff]
    %v152 = vld [vmem:[#allocation2 + $0x3c8] sm:$0xff]
    %v153 = vld [vmem:[#allocation2 + $0x3d0] sm:$0xff]
    %v154 = vld [vmem:[#allocation2 + $0x3d8] sm:$0xff]
    %v155 = vld [vmem:[#allocation2 + $0x3e0] sm:$0xff]
    %v156 = vld [vmem:[#allocation2 + $0x3e8] sm:$0xff]
    %v157 = vld [vmem:[#allocation2 + $0x3f0] sm:$0xff]
    %v158 = vld [vmem:[#allocation2 + $0x3f8] sm:$0xff]
    %v159 = vadd.f32 %v31, %v32
    %160 = vadd.xlane.f32.xlu0 %v159
    %v161 = vpop.xlane.xlu0 %160
    %v162 = vadd.f32 %v33, %v34
    %163 = vadd.xlane.f32.xlu0 %v162
    %v164 = vpop.xlane.xlu0 %163
    %v165 = vadd.f32 %v35, %v36
    %166 = vadd.xlane.f32.xlu0 %v165
    %v167 = vpop.xlane.xlu0 %166
    %v168 = vadd.f32 %v37, %v38
    %169 = vadd.xlane.f32.xlu0 %v168
    %v170 = vpop.xlane.xlu0 %169
    %v171 = vadd.f32 %v39, %v40
    %172 = vadd.xlane.f32.xlu0 %v171
    %v173 = vpop.xlane.xlu0 %172
    %v174 = vadd.f32 %v41, %v42
    %175 = vadd.xlane.f32.xlu0 %v174
    %v176 = vpop.xlane.xlu0 %175
    %v177 = vadd.f32 %v43, %v44
    %178 = vadd.xlane.f32.xlu0 %v177
    %v179 = vpop.xlane.xlu0 %178
    %v180 = vadd.f32 %v45, %v46
    %181 = vadd.xlane.f32.xlu0 %v180
    %v182 = vpop.xlane.xlu0 %181
    %v183 = vadd.f32 %v47, %v48
    %184 = vadd.xlane.f32.xlu0 %v183
    %v185 = vpop.xlane.xlu0 %184
    %v186 = vadd.f32 %v49, %v50
    %187 = vadd.xlane.f32.xlu0 %v186
    %v188 = vpop.xlane.xlu0 %187
    %v189 = vadd.f32 %v51, %v52
    %190 = vadd.xlane.f32.xlu0 %v189
    %v191 = vpop.xlane.xlu0 %190
    %v192 = vadd.f32 %v53, %v54
    %193 = vadd.xlane.f32.xlu0 %v192
    %v194 = vpop.xlane.xlu0 %193
    %v195 = vadd.f32 %v55, %v56
    %196 = vadd.xlane.f32.xlu0 %v195
    %v197 = vpop.xlane.xlu0 %196
    %v198 = vadd.f32 %v57, %v58
    %199 = vadd.xlane.f32.xlu0 %v198
    %v200 = vpop.xlane.xlu0 %199
    %v201 = vadd.f32 %v59, %v60
    %202 = vadd.xlane.f32.xlu0 %v201
    %v203 = vpop.xlane.xlu0 %202
    %v204 = vadd.f32 %v61, %v62
    %205 = vadd.xlane.f32.xlu0 %v204
    %v206 = vpop.xlane.xlu0 %205
    %v207 = vadd.f32 %v63, %v64
    %208 = vadd.xlane.f32.xlu0 %v207
    %v209 = vpop.xlane.xlu0 %208
    %v210 = vadd.f32 %v65, %v66
    %211 = vadd.xlane.f32.xlu0 %v210
    %v212 = vpop.xlane.xlu0 %211
    %v213 = vadd.f32 %v67, %v68
    %214 = vadd.xlane.f32.xlu0 %v213
    %v215 = vpop.xlane.xlu0 %214
    %v216 = vadd.f32 %v69, %v70
    %217 = vadd.xlane.f32.xlu0 %v216
    %v218 = vpop.xlane.xlu0 %217
    %v219 = vadd.f32 %v71, %v72
    %220 = vadd.xlane.f32.xlu0 %v219
    %v221 = vpop.xlane.xlu0 %220
    %v222 = vadd.f32 %v73, %v74
    %223 = vadd.xlane.f32.xlu0 %v222
    %v224 = vpop.xlane.xlu0 %223
    %v225 = vadd.f32 %v75, %v76
    %226 = vadd.xlane.f32.xlu0 %v225
    %v227 = vpop.xlane.xlu0 %226
    %v228 = vadd.f32 %v77, %v78
    %229 = vadd.xlane.f32.xlu0 %v228
    %v230 = vpop.xlane.xlu0 %229
    %v231 = vadd.f32 %v79, %v80
    %232 = vadd.xlane.f32.xlu0 %v231
    %v233 = vpop.xlane.xlu0 %232
    %v234 = vadd.f32 %v81, %v82
    %235 = vadd.xlane.f32.xlu0 %v234
    %v236 = vpop.xlane.xlu0 %235
    %v237 = vadd.f32 %v83, %v84
    %238 = vadd.xlane.f32.xlu0 %v237
    %v239 = vpop.xlane.xlu0 %238
    %v240 = vadd.f32 %v85, %v86
    %241 = vadd.xlane.f32.xlu0 %v240
    %v242 = vpop.xlane.xlu0 %241
    %v243 = vadd.f32 %v87, %v88
    %244 = vadd.xlane.f32.xlu0 %v243
    %v245 = vpop.xlane.xlu0 %244
    %v246 = vadd.f32 %v89, %v90
    %247 = vadd.xlane.f32.xlu0 %v246
    %v248 = vpop.xlane.xlu0 %247
    %v249 = vadd.f32 %v91, %v92
    %250 = vadd.xlane.f32.xlu0 %v249
    %v251 = vpop.xlane.xlu0 %250
    %v252 = vadd.f32 %v93, %v94
    %253 = vadd.xlane.f32.xlu0 %v252
    %v254 = vpop.xlane.xlu0 %253
    %v255 = vadd.f32 %v95, %v96
    %256 = vadd.xlane.f32.xlu0 %v255
    %v257 = vpop.xlane.xlu0 %256
    %v258 = vadd.f32 %v97, %v98
    %259 = vadd.xlane.f32.xlu0 %v258
    %v260 = vpop.xlane.xlu0 %259
    %v261 = vadd.f32 %v99, %v100
    %262 = vadd.xlane.f32.xlu0 %v261
    %v263 = vpop.xlane.xlu0 %262
    %v264 = vadd.f32 %v101, %v102
    %265 = vadd.xlane.f32.xlu0 %v264
    %v266 = vpop.xlane.xlu0 %265
    %v267 = vadd.f32 %v103, %v104
    %268 = vadd.xlane.f32.xlu0 %v267
    %v269 = vpop.xlane.xlu0 %268
    %v270 = vadd.f32 %v105, %v106
    %271 = vadd.xlane.f32.xlu0 %v270
    %v272 = vpop.xlane.xlu0 %271
    %v273 = vadd.f32 %v107, %v108
    %274 = vadd.xlane.f32.xlu0 %v273
    %v275 = vpop.xlane.xlu0 %274
    %v276 = vadd.f32 %v109, %v110
    %277 = vadd.xlane.f32.xlu0 %v276
    %v278 = vpop.xlane.xlu0 %277
    %v279 = vadd.f32 %v111, %v112
    %280 = vadd.xlane.f32.xlu0 %v279
    %v281 = vpop.xlane.xlu0 %280
    %v282 = vadd.f32 %v113, %v114
    %283 = vadd.xlane.f32.xlu0 %v282
    %v284 = vpop.xlane.xlu0 %283
    %v285 = vadd.f32 %v115, %v116
    %286 = vadd.xlane.f32.xlu0 %v285
    %v287 = vpop.xlane.xlu0 %286
    %v288 = vadd.f32 %v117, %v118
    %289 = vadd.xlane.f32.xlu0 %v288
    %v290 = vpop.xlane.xlu0 %289
    %v291 = vadd.f32 %v119, %v120
    %292 = vadd.xlane.f32.xlu0 %v291
    %v293 = vpop.xlane.xlu0 %292
    %v294 = vadd.f32 %v121, %v122
    %295 = vadd.xlane.f32.xlu0 %v294
    %v296 = vpop.xlane.xlu0 %295
    %v297 = vadd.f32 %v123, %v124
    %298 = vadd.xlane.f32.xlu0 %v297
    %v299 = vpop.xlane.xlu0 %298
    %v300 = vadd.f32 %v125, %v126
    %301 = vadd.xlane.f32.xlu0 %v300
    %v302 = vpop.xlane.xlu0 %301
    %v303 = vadd.f32 %v127, %v128
    %304 = vadd.xlane.f32.xlu0 %v303
    %v305 = vpop.xlane.xlu0 %304
    %v306 = vadd.f32 %v129, %v130
    %307 = vadd.xlane.f32.xlu0 %v306
    %v308 = vpop.xlane.xlu0 %307
    %v309 = vadd.f32 %v131, %v132
    %310 = vadd.xlane.f32.xlu0 %v309
    %v311 = vpop.xlane.xlu0 %310
    %v312 = vadd.f32 %v133, %v134
    %313 = vadd.xlane.f32.xlu0 %v312
    %v314 = vpop.xlane.xlu0 %313
    %v315 = vadd.f32 %v135, %v136
    %316 = vadd.xlane.f32.xlu0 %v315
    %v317 = vpop.xlane.xlu0 %316
    %v318 = vadd.f32 %v137, %v138
    %319 = vadd.xlane.f32.xlu0 %v318
    %v320 = vpop.xlane.xlu0 %319
    %v321 = vadd.f32 %v139, %v140
    %322 = vadd.xlane.f32.xlu0 %v321
    %v323 = vpop.xlane.xlu0 %322
    %v324 = vadd.f32 %v141, %v142
    %325 = vadd.xlane.f32.xlu0 %v324
    %v326 = vpop.xlane.xlu0 %325
    %v327 = vadd.f32 %v143, %v144
    %328 = vadd.xlane.f32.xlu0 %v327
    %v329 = vpop.xlane.xlu0 %328
    %v330 = vadd.f32 %v145, %v146
    %331 = vadd.xlane.f32.xlu0 %v330
    %v332 = vpop.xlane.xlu0 %331
    %v333 = vadd.f32 %v147, %v148
    %334 = vadd.xlane.f32.xlu0 %v333
    %v335 = vpop.xlane.xlu0 %334
    %v336 = vadd.f32 %v149, %v150
    %337 = vadd.xlane.f32.xlu0 %v336
    %v338 = vpop.xlane.xlu0 %337
    %v339 = vadd.f32 %v151, %v152
    %340 = vadd.xlane.f32.xlu0 %v339
    %v341 = vpop.xlane.xlu0 %340
    %v342 = vadd.f32 %v153, %v154
    %343 = vadd.xlane.f32.xlu0 %v342
    %v344 = vpop.xlane.xlu0 %343
    %v345 = vadd.f32 %v155, %v156
    %346 = vadd.xlane.f32.xlu0 %v345
    %v347 = vpop.xlane.xlu0 %346
    %v348 = vadd.f32 %v157, %v158
    %349 = vadd.xlane.f32.xlu0 %v348
    %v350 = vpop.xlane.xlu0 %349
    %v351 = vmul.f32 %v161, 0.00390625
    %v352 = vmul.f32 %v164, 0.00390625
    %v353 = vmul.f32 %v167, 0.00390625
    %v354 = vmul.f32 %v170, 0.00390625
    %v355 = vmul.f32 %v173, 0.00390625
    %v356 = vmul.f32 %v176, 0.00390625
    %v357 = vmul.f32 %v179, 0.00390625
    %v358 = vmul.f32 %v182, 0.00390625
    %v359 = vmul.f32 %v185, 0.00390625
    %v360 = vmul.f32 %v188, 0.00390625
    %v361 = vmul.f32 %v191, 0.00390625
    %v362 = vmul.f32 %v194, 0.00390625
    %v363 = vmul.f32 %v197, 0.00390625
    %v364 = vmul.f32 %v200, 0.00390625
    %v365 = vmul.f32 %v203, 0.00390625
    %v366 = vmul.f32 %v206, 0.00390625
    %v367 = vmul.f32 %v209, 0.00390625
    %v368 = vmul.f32 %v212, 0.00390625
    %v369 = vmul.f32 %v215, 0.00390625
    %v370 = vmul.f32 %v218, 0.00390625
    %v371 = vmul.f32 %v221, 0.00390625
    %v372 = vmul.f32 %v224, 0.00390625
    %v373 = vmul.f32 %v227, 0.00390625
    %v374 = vmul.f32 %v230, 0.00390625
    %v375 = vmul.f32 %v233, 0.00390625
    %v376 = vmul.f32 %v236, 0.00390625
    %v377 = vmul.f32 %v239, 0.00390625
    %v378 = vmul.f32 %v242, 0.00390625
    %v379 = vmul.f32 %v245, 0.00390625
    %v380 = vmul.f32 %v248, 0.00390625
    %v381 = vmul.f32 %v251, 0.00390625
    %v382 = vmul.f32 %v254, 0.00390625
    %v383 = vmul.f32 %v257, 0.00390625
    %v384 = vmul.f32 %v260, 0.00390625
    %v385 = vmul.f32 %v263, 0.00390625
    %v386 = vmul.f32 %v266, 0.00390625
    %v387 = vmul.f32 %v269, 0.00390625
    %v388 = vmul.f32 %v272, 0.00390625
    %v389 = vmul.f32 %v275, 0.00390625
    %v390 = vmul.f32 %v278, 0.00390625
    %v391 = vmul.f32 %v281, 0.00390625
    %v392 = vmul.f32 %v284, 0.00390625
    %v393 = vmul.f32 %v287, 0.00390625
    %v394 = vmul.f32 %v290, 0.00390625
    %v395 = vmul.f32 %v293, 0.00390625
    %v396 = vmul.f32 %v296, 0.00390625
    %v397 = vmul.f32 %v299, 0.00390625
    %v398 = vmul.f32 %v302, 0.00390625
    %v399 = vmul.f32 %v305, 0.00390625
    %v400 = vmul.f32 %v308, 0.00390625
    %v401 = vmul.f32 %v311, 0.00390625
    %v402 = vmul.f32 %v314, 0.00390625
    %v403 = vmul.f32 %v317, 0.00390625
    %v404 = vmul.f32 %v320, 0.00390625
    %v405 = vmul.f32 %v323, 0.00390625
    %v406 = vmul.f32 %v326, 0.00390625
    %v407 = vmul.f32 %v329, 0.00390625
    %v408 = vmul.f32 %v332, 0.00390625
    %v409 = vmul.f32 %v335, 0.00390625
    %v410 = vmul.f32 %v338, 0.00390625
    %v411 = vmul.f32 %v341, 0.00390625
    %v412 = vmul.f32 %v344, 0.00390625
    %v413 = vmul.f32 %v347, 0.00390625
    %v414 = vmul.f32 %v350, 0.00390625
    %v415 = vld [vmem:[%s1] sm:$0xff]
    %v416 = vld [vmem:[%s1 + $0x8] sm:$0xff]
    %v417 = vld [vmem:[%s1 + $0x10] sm:$0xff]
    %v418 = vld [vmem:[%s1 + $0x18] sm:$0xff]
    %v483 = vlaneseq
    %v484 = vand.u32 %v483, 127
    %v485 = vperm.slane %v351, %v484
    %v486 = vadd.s32 %v484, 4294967288
    %v487 = vperm.slane %v352, %v486
    %vm488 = vcmask 130112
    %v489 = vsel %vm488, %v487, %v485
    %v490 = vadd.s32 %v484, 4294967280
    %v491 = vperm.slane %v353, %v490
    %vm492 = vcmask 195712
    %v493 = vsel %vm492, %v491, %v489
    %v494 = vadd.s32 %v484, 4294967272
    %v495 = vperm.slane %v354, %v494
    %vm496 = vcmask 261312
    %v497 = vsel %vm496, %v495, %v493
    %v498 = vperm.slane %v355, %v484
    %v499 = vperm.slane %v356, %v486
    %v500 = vsel %vm488, %v499, %v498
    %v501 = vperm.slane %v357, %v490
    %v502 = vsel %vm492, %v501, %v500
    %v503 = vperm.slane %v358, %v494
    %v504 = vsel %vm496, %v503, %v502
    %v505 = vperm.slane %v359, %v484
    %v506 = vperm.slane %v360, %v486
    %v507 = vsel %vm488, %v506, %v505
    %v508 = vperm.slane %v361, %v490
    %v509 = vsel %vm492, %v508, %v507
    %v510 = vperm.slane %v362, %v494
    %v511 = vsel %vm496, %v510, %v509
    %v512 = vperm.slane %v363, %v484
    %v513 = vperm.slane %v364, %v486
    %v514 = vsel %vm488, %v513, %v512
    %v515 = vperm.slane %v365, %v490
    %v516 = vsel %vm492, %v515, %v514
    %v517 = vperm.slane %v366, %v494
    %v518 = vsel %vm496, %v517, %v516
    %v519 = vperm.slane %v367, %v484
    %v520 = vperm.slane %v368, %v486
    %v521 = vsel %vm488, %v520, %v519
    %v522 = vperm.slane %v369, %v490
    %v523 = vsel %vm492, %v522, %v521
    %v524 = vperm.slane %v370, %v494
    %v525 = vsel %vm496, %v524, %v523
    %v526 = vperm.slane %v371, %v484
    %v527 = vperm.slane %v372, %v486
    %v528 = vsel %vm488, %v527, %v526
    %v529 = vperm.slane %v373, %v490
    %v530 = vsel %vm492, %v529, %v528
    %v531 = vperm.slane %v374, %v494
    %v532 = vsel %vm496, %v531, %v530
    %v533 = vperm.slane %v375, %v484
    %v534 = vperm.slane %v376, %v486
    %v535 = vsel %vm488, %v534, %v533
    %v536 = vperm.slane %v377, %v490
    %v537 = vsel %vm492, %v536, %v535
    %v538 = vperm.slane %v378, %v494
    %v539 = vsel %vm496, %v538, %v537
    %v540 = vperm.slane %v379, %v484
    %v541 = vperm.slane %v380, %v486
    %v542 = vsel %vm488, %v541, %v540
    %v543 = vperm.slane %v381, %v490
    %v544 = vsel %vm492, %v543, %v542
    %v545 = vperm.slane %v382, %v494
    %v546 = vsel %vm496, %v545, %v544
    %v547 = vperm.slane %v383, %v484
    %v548 = vperm.slane %v384, %v486
    %v549 = vsel %vm488, %v548, %v547
    %v550 = vperm.slane %v385, %v490
    %v551 = vsel %vm492, %v550, %v549
    %v552 = vperm.slane %v386, %v494
    %v553 = vsel %vm496, %v552, %v551
    %v554 = vperm.slane %v387, %v484
    %v555 = vperm.slane %v388, %v486
    %v556 = vsel %vm488, %v555, %v554
    %v557 = vperm.slane %v389, %v490
    %v558 = vsel %vm492, %v557, %v556
    %v559 = vperm.slane %v390, %v494
    %v560 = vsel %vm496, %v559, %v558
    %v561 = vperm.slane %v391, %v484
    %v562 = vperm.slane %v392, %v486
    %v563 = vsel %vm488, %v562, %v561
    %v564 = vperm.slane %v393, %v490
    %v565 = vsel %vm492, %v564, %v563
    %v566 = vperm.slane %v394, %v494
    %v567 = vsel %vm496, %v566, %v565
    %v568 = vperm.slane %v395, %v484
    %v569 = vperm.slane %v396, %v486
    %v570 = vsel %vm488, %v569, %v568
    %v571 = vperm.slane %v397, %v490
    %v572 = vsel %vm492, %v571, %v570
    %v573 = vperm.slane %v398, %v494
    %v574 = vsel %vm496, %v573, %v572
    %v575 = vperm.slane %v399, %v484
    %v576 = vperm.slane %v400, %v486
    %v577 = vsel %vm488, %v576, %v575
    %v578 = vperm.slane %v401, %v490
    %v579 = vsel %vm492, %v578, %v577
    %v580 = vperm.slane %v402, %v494
    %v581 = vsel %vm496, %v580, %v579
    %v582 = vperm.slane %v403, %v484
    %v583 = vperm.slane %v404, %v486
    %v584 = vsel %vm488, %v583, %v582
    %v585 = vperm.slane %v405, %v490
    %v586 = vsel %vm492, %v585, %v584
    %v587 = vperm.slane %v406, %v494
    %v588 = vsel %vm496, %v587, %v586
    %v589 = vperm.slane %v407, %v484
    %v590 = vperm.slane %v408, %v486
    %v591 = vsel %vm488, %v590, %v589
    %v592 = vperm.slane %v409, %v490
    %v593 = vsel %vm492, %v592, %v591
    %v594 = vperm.slane %v410, %v494
    %v595 = vsel %vm496, %v594, %v593
    %v596 = vperm.slane %v411, %v484
    %v597 = vperm.slane %v412, %v486
    %v598 = vsel %vm488, %v597, %v596
    %v599 = vperm.slane %v413, %v490
    %v600 = vsel %vm492, %v599, %v598
    %v601 = vperm.slane %v414, %v494
    %v602 = vsel %vm496, %v601, %v600
    %vm603 = vcmask 1041409
    %v604 = vsel %vm603, %v504, %v497
    %vm605 = vcmask 1042434
    %v606 = vsel %vm605, %v511, %v604
    %vm607 = vcmask 1043459
    %v608 = vsel %vm607, %v518, %v606
    %vm609 = vcmask 1044484
    %v610 = vsel %vm609, %v525, %v608
    %vm611 = vcmask 1045509
    %v612 = vsel %vm611, %v532, %v610
    %vm613 = vcmask 1046534
    %v614 = vsel %vm613, %v539, %v612
    %vm615 = vcmask 1047559
    %v616 = vsel %vm615, %v546, %v614
    %v617 = vsel %vm603, %v560, %v553
    %v618 = vsel %vm605, %v567, %v617
    %v619 = vsel %vm607, %v574, %v618
    %v620 = vsel %vm609, %v581, %v619
    %v621 = vsel %vm611, %v588, %v620
    %v622 = vsel %vm613, %v595, %v621
    %v623 = vsel %vm615, %v602, %v622
    %vm624 = vcmask 261120
    %v625 = vsel %vm624, %v616, 0
    %v627 = vsel %vm624, %v623, 0
    %629 = vmatpush.msra.mxu0 0.0
    %630 = vmatpush.msra.mxu0 0.0
    %631 = vmatpush.msra.mxu0 0.0
    %632 = vmatpush.msra.mxu0 0.0
    %633 = vmatpush.msra.mxu0 0.0
    %634 = vmatpush.msra.mxu0 0.0
    %635 = vmatpush.msra.mxu0 0.0
    %636 = vmatpush.msra.mxu0 0.0
    %637 = vmatpush.msra.mxu0 0.0
    %638 = vmatpush.msra.mxu0 0.0
    %639 = vmatpush.msra.mxu0 0.0
    %640 = vmatpush.msra.mxu0 0.0
    %641 = vmatpush.msra.mxu0 %v418
    %642 = vmatpush.msra.mxu0 %v417
    %643 = vmatpush.msra.mxu0 %v416
    %644 = vmatpush.msra.mxu0 %v415
    %645 = vmatmul.f32.gmra.mxu0 %v625
    %v646 = vpop.f32.mrf.mxu0
    %v647 = vadd.f32 0.0, %v646
    %648 = vmatmul.f32.gmra.mxu0 %v627
    %v649 = vpop.f32.mrf.mxu0
    %v650 = vadd.f32 0.0, %v649
    %651 = vdwg.mxu0
    %v652 = vmul.f32 %v647, 0.5
    %v653 = vmul.f32 %v650, 0.5
    %v654 = vmul.f32 %v647, 0.70710677
    %v655 = vmul.f32 %v650, 0.70710677
    %v656 = vmul.f32 %v654, %v654
    %v657 = vmin.f32 16.0, %v656
    %v658 = vmul.f32 %v657, 2.1237322e-06
    %v659 = vadd.f32 %v658, 0.00028619796
    %v660 = vmul.f32 %v657, %v659
    %v661 = vadd.f32 %v660, 0.0036580483
    %v662 = vmul.f32 %v657, %v661
    %v663 = vadd.f32 %v662, 0.05243302
    %v664 = vmul.f32 %v657, %v663
    %v665 = vadd.f32 %v664, 0.18741608
    %v666 = vmul.f32 %v657, %v665
    %v667 = vadd.f32 %v666, 1.1283791
    %v668 = vmul.f32 %v654, %v667
    %v669 = vmul.f32 %v657, 3.8918573e-05
    %v670 = vadd.f32 %v669, 0.001143296
    %v671 = vmul.f32 %v657, %v670
    %v672 = vadd.f32 %v671, 0.014752088
    %v673 = vmul.f32 %v657, %v672
    %v674 = vadd.f32 %v673, 0.112945676
    %v675 = vmul.f32 %v657, %v674
    %v676 = vadd.f32 %v675, 0.4994258
    %v677 = vmul.f32 %v657, %v676
    %v678 = vadd.f32 %v677, 1.0
    %v679 = vrcp.pop %v678
    %v680 = vmul.f32 %v678, %v679
    %v681 = vsub.f32 1.0, %v680
    %v682 = vmul.f32 %v679, %v681
    %v683 = vadd.f32 %v679, %v682
    %vm684 = vweird.f32 %v678
    %vm685 = vweird.f32 %v679
    %vm686 = vmor %vm684, %vm685
    %v687 = vsel %vm686, %v679, %v683
    %v688 = vand.u32 2147483647, %v678
    %vm689 = vcmp.eq.f32.partialorder %v688, 8.507059e+37
    %v690 = vand.u32 %v678, 2147483648
    %v691 = vor.u32 1.1754944e-38, %v690
    %v692 = vsel %vm689, %v691, %v687
    %v693 = vmul.f32 %v668, %v692
    %v694 = vmin.f32 %v693, 1.0
    %v695 = vmax.f32 %v694, -1.0
    %v696 = vmul.f32 %v655, %v655
    %v697 = vmin.f32 16.0, %v696
    %v698 = vmul.f32 %v697, 2.1237322e-06
    %v699 = vadd.f32 %v698, 0.00028619796
    %v700 = vmul.f32 %v697, %v699
    %v701 = vadd.f32 %v700, 0.0036580483
    %v702 = vmul.f32 %v697, %v701
    %v703 = vadd.f32 %v702, 0.05243302
    %v704 = vmul.f32 %v697, %v703
    %v705 = vadd.f32 %v704, 0.18741608
    %v706 = vmul.f32 %v697, %v705
    %v707 = vadd.f32 %v706, 1.1283791
    %v708 = vmul.f32 %v655, %v707
    %v709 = vmul.f32 %v697, 3.8918573e-05
    %v710 = vadd.f32 %v709, 0.001143296
    %v711 = vmul.f32 %v697, %v710
    %v712 = vadd.f32 %v711, 0.014752088
    %v713 = vmul.f32 %v697, %v712
    %v714 = vadd.f32 %v713, 0.112945676
    %v715 = vmul.f32 %v697, %v714
    %v716 = vadd.f32 %v715, 0.4994258
    %v717 = vmul.f32 %v697, %v716
    %v718 = vadd.f32 %v717, 1.0
    %v719 = vrcp.pop %v718
    %v720 = vmul.f32 %v718, %v719
    %v721 = vsub.f32 1.0, %v720
    %v722 = vmul.f32 %v719, %v721
    %v723 = vadd.f32 %v719, %v722
    %vm724 = vweird.f32 %v718
    %vm725 = vweird.f32 %v719
    %vm726 = vmor %vm724, %vm725
    %v727 = vsel %vm726, %v719, %v723
    %v728 = vand.u32 2147483647, %v718
    %vm729 = vcmp.eq.f32.partialorder %v728, 8.507059e+37
    %v730 = vand.u32 %v718, 2147483648
    %v731 = vor.u32 1.1754944e-38, %v730
    %v732 = vsel %vm729, %v731, %v727
    %v733 = vmul.f32 %v708, %v732
    %v734 = vmin.f32 %v733, 1.0
    %v735 = vmax.f32 %v734, -1.0
    %v736 = vadd.f32 %v695, 1.0
    %v737 = vadd.f32 %v735, 1.0
    %v738 = vmul.f32 %v652, %v736
    %v739 = vmul.f32 %v653, %v737
    %v740 = vld [vmem:[%s2] sm:$0xff]
    %vm741 = vcmask 64512
    %v743 = vsel %vm741, %v738, 0
    %v746 = vsel %vm741, %v739, 0
    %748 = vmatpush.msra.mxu0 0.0
    %749 = vmatpush.msra.mxu0 0.0
    %750 = vmatpush.msra.mxu0 0.0
    %751 = vmatpush.msra.mxu0 0.0
    %752 = vmatpush.msra.mxu0 0.0
    %753 = vmatpush.msra.mxu0 0.0
    %754 = vmatpush.msra.mxu0 0.0
    %755 = vmatpush.msra.mxu0 0.0
    %756 = vmatpush.msra.mxu0 0.0
    %757 = vmatpush.msra.mxu0 0.0
    %758 = vmatpush.msra.mxu0 0.0
    %759 = vmatpush.msra.mxu0 0.0
    %760 = vmatpush.msra.mxu0 0.0
    %761 = vmatpush.msra.mxu0 0.0
    %762 = vmatpush.msra.mxu0 0.0
    %763 = vmatpush.msra.mxu0 %v740
    %764 = vmatmul.f32.gmra.mxu0 %v743
    %v765 = vpop.f32.mrf.mxu0
    %v766 = vadd.f32 0.0, %v765
    %767 = vmatmul.f32.gmra.mxu0 %v746
    %v768 = vpop.f32.mrf.mxu0
    %v769 = vadd.f32 0.0, %v768
    %770 = vdwg.mxu0
    %v771 = vxor.u32 %v766, 2147483648
    %v772 = vxor.u32 %v769, 2147483648
    %v773 = vmul.f32 %v771, 1.442695
    %v774 = vpow.pop %v773
    %v775 = vmul.f32 %v772, 1.442695
    %v776 = vpow.pop %v775
    %v777 = vadd.f32 %v774, 1.0
    %v778 = vadd.f32 %v776, 1.0
    %v779 = vrcp.pop %v777
    %v780 = vmul.f32 %v777, %v779
    %v781 = vsub.f32 1.0, %v780
    %v782 = vmul.f32 %v779, %v781
    %v783 = vadd.f32 %v779, %v782
    %vm784 = vweird.f32 %v777
    %vm785 = vweird.f32 %v779
    %vm786 = vmor %vm784, %vm785
    %v787 = vsel %vm786, %v779, %v783
    %v788 = vand.u32 2147483647, %v777
    %vm789 = vcmp.eq.f32.partialorder %v788, 8.507059e+37
    %v790 = vand.u32 %v777, 2147483648
    %v791 = vor.u32 1.1754944e-38, %v790
    %v792 = vsel %vm789, %v791, %v787
    %v793 = vmul.f32 1.0, %v792
    %v794 = vrcp.pop %v778
    %v795 = vmul.f32 %v778, %v794
    %v796 = vsub.f32 1.0, %v795
    %v797 = vmul.f32 %v794, %v796
    %v798 = vadd.f32 %v794, %v797
    %vm799 = vweird.f32 %v778
    %vm800 = vweird.f32 %v794
    %vm801 = vmor %vm799, %vm800
    %v802 = vsel %vm801, %v794, %v798
    %v803 = vand.u32 2147483647, %v778
    %vm804 = vcmp.eq.f32.partialorder %v803, 8.507059e+37
    %v805 = vand.u32 %v778, 2147483648
    %v806 = vor.u32 1.1754944e-38, %v805
    %v807 = vsel %vm804, %v806, %v802
    %v808 = vmul.f32 1.0, %v807
    %v809 = vperm.slane %v793, 0
    %v810 = vlaneseq
    %v811 = vshrl.u32 %v810, 7
    %813 = vset.pattern.permute.xlu0 %v811
    %814 = vperm.xlu0 %813, %v809
    %v815 = vpop.permute.xlu0 %814
    %v816 = vlaneseq
    %v817 = vshrl.u32 %v816, 7
    %v818 = vadd.s32 %v817, 8
    %819 = vset.pattern.permute.xlu0 %v818
    %820 = vperm.xlu0 %819, %v809
    %v821 = vpop.permute.xlu0 %820
    %v822 = vlaneseq
    %v823 = vshrl.u32 %v822, 7
    %v824 = vadd.s32 %v823, 16
    %825 = vset.pattern.permute.xlu0 %v824
    %826 = vperm.xlu0 %825, %v809
    %v827 = vpop.permute.xlu0 %826
    %v828 = vlaneseq
    %v829 = vshrl.u32 %v828, 7
    %v830 = vadd.s32 %v829, 24
    %831 = vset.pattern.permute.xlu0 %v830
    %832 = vperm.xlu0 %831, %v809
    %v833 = vpop.permute.xlu0 %832
    %v834 = vperm.slane %v793, 1
    %v835 = vlaneseq
    %v836 = vshrl.u32 %v835, 7
    %838 = vset.pattern.permute.xlu0 %v836
    %839 = vperm.xlu0 %838, %v834
    %v840 = vpop.permute.xlu0 %839
    %v841 = vlaneseq
    %v842 = vshrl.u32 %v841, 7
    %v843 = vadd.s32 %v842, 8
    %844 = vset.pattern.permute.xlu0 %v843
    %845 = vperm.xlu0 %844, %v834
    %v846 = vpop.permute.xlu0 %845
    %v847 = vlaneseq
    %v848 = vshrl.u32 %v847, 7
    %v849 = vadd.s32 %v848, 16
    %850 = vset.pattern.permute.xlu0 %v849
    %851 = vperm.xlu0 %850, %v834
    %v852 = vpop.permute.xlu0 %851
    %v853 = vlaneseq
    %v854 = vshrl.u32 %v853, 7
    %v855 = vadd.s32 %v854, 24
    %856 = vset.pattern.permute.xlu0 %v855
    %857 = vperm.xlu0 %856, %v834
    %v858 = vpop.permute.xlu0 %857
    %v859 = vperm.slane %v793, 2
    %v860 = vlaneseq
    %v861 = vshrl.u32 %v860, 7
    %863 = vset.pattern.permute.xlu0 %v861
    %864 = vperm.xlu0 %863, %v859
    %v865 = vpop.permute.xlu0 %864
    %v866 = vlaneseq
    %v867 = vshrl.u32 %v866, 7
    %v868 = vadd.s32 %v867, 8
    %869 = vset.pattern.permute.xlu0 %v868
    %870 = vperm.xlu0 %869, %v859
    %v871 = vpop.permute.xlu0 %870
    %v872 = vlaneseq
    %v873 = vshrl.u32 %v872, 7
    %v874 = vadd.s32 %v873, 16
    %875 = vset.pattern.permute.xlu0 %v874
    %876 = vperm.xlu0 %875, %v859
    %v877 = vpop.permute.xlu0 %876
    %v878 = vlaneseq
    %v879 = vshrl.u32 %v878, 7
    %v880 = vadd.s32 %v879, 24
    %881 = vset.pattern.permute.xlu0 %v880
    %882 = vperm.xlu0 %881, %v859
    %v883 = vpop.permute.xlu0 %882
    %v884 = vperm.slane %v793, 3
    %v885 = vlaneseq
    %v886 = vshrl.u32 %v885, 7
    %888 = vset.pattern.permute.xlu0 %v886
    %889 = vperm.xlu0 %888, %v884
    %v890 = vpop.permute.xlu0 %889
    %v891 = vlaneseq
    %v892 = vshrl.u32 %v891, 7
    %v893 = vadd.s32 %v892, 8
    %894 = vset.pattern.permute.xlu0 %v893
    %895 = vperm.xlu0 %894, %v884
    %v896 = vpop.permute.xlu0 %895
    %v897 = vlaneseq
    %v898 = vshrl.u32 %v897, 7
    %v899 = vadd.s32 %v898, 16
    %900 = vset.pattern.permute.xlu0 %v899
    %901 = vperm.xlu0 %900, %v884
    %v902 = vpop.permute.xlu0 %901
    %v903 = vlaneseq
    %v904 = vshrl.u32 %v903, 7
    %v905 = vadd.s32 %v904, 24
    %906 = vset.pattern.permute.xlu0 %v905
    %907 = vperm.xlu0 %906, %v884
    %v908 = vpop.permute.xlu0 %907
    %v909 = vperm.slane %v793, 4
    %v910 = vlaneseq
    %v911 = vshrl.u32 %v910, 7
    %913 = vset.pattern.permute.xlu0 %v911
    %914 = vperm.xlu0 %913, %v909
    %v915 = vpop.permute.xlu0 %914
    %v916 = vlaneseq
    %v917 = vshrl.u32 %v916, 7
    %v918 = vadd.s32 %v917, 8
    %919 = vset.pattern.permute.xlu0 %v918
    %920 = vperm.xlu0 %919, %v909
    %v921 = vpop.permute.xlu0 %920
    %v922 = vlaneseq
    %v923 = vshrl.u32 %v922, 7
    %v924 = vadd.s32 %v923, 16
    %925 = vset.pattern.permute.xlu0 %v924
    %926 = vperm.xlu0 %925, %v909
    %v927 = vpop.permute.xlu0 %926
    %v928 = vlaneseq
    %v929 = vshrl.u32 %v928, 7
    %v930 = vadd.s32 %v929, 24
    %931 = vset.pattern.permute.xlu0 %v930
    %932 = vperm.xlu0 %931, %v909
    %v933 = vpop.permute.xlu0 %932
    %v934 = vperm.slane %v793, 5
    %v935 = vlaneseq
    %v936 = vshrl.u32 %v935, 7
    %938 = vset.pattern.permute.xlu0 %v936
    %939 = vperm.xlu0 %938, %v934
    %v940 = vpop.permute.xlu0 %939
    %v941 = vlaneseq
    %v942 = vshrl.u32 %v941, 7
    %v943 = vadd.s32 %v942, 8
    %944 = vset.pattern.permute.xlu0 %v943
    %945 = vperm.xlu0 %944, %v934
    %v946 = vpop.permute.xlu0 %945
    %v947 = vlaneseq
    %v948 = vshrl.u32 %v947, 7
    %v949 = vadd.s32 %v948, 16
    %950 = vset.pattern.permute.xlu0 %v949
    %951 = vperm.xlu0 %950, %v934
    %v952 = vpop.permute.xlu0 %951
    %v953 = vlaneseq
    %v954 = vshrl.u32 %v953, 7
    %v955 = vadd.s32 %v954, 24
    %956 = vset.pattern.permute.xlu0 %v955
    %957 = vperm.xlu0 %956, %v934
    %v958 = vpop.permute.xlu0 %957
    %v959 = vperm.slane %v793, 6
    %v960 = vlaneseq
    %v961 = vshrl.u32 %v960, 7
    %963 = vset.pattern.permute.xlu0 %v961
    %964 = vperm.xlu0 %963, %v959
    %v965 = vpop.permute.xlu0 %964
    %v966 = vlaneseq
    %v967 = vshrl.u32 %v966, 7
    %v968 = vadd.s32 %v967, 8
    %969 = vset.pattern.permute.xlu0 %v968
    %970 = vperm.xlu0 %969, %v959
    %v971 = vpop.permute.xlu0 %970
    %v972 = vlaneseq
    %v973 = vshrl.u32 %v972, 7
    %v974 = vadd.s32 %v973, 16
    %975 = vset.pattern.permute.xlu0 %v974
    %976 = vperm.xlu0 %975, %v959
    %v977 = vpop.permute.xlu0 %976
    %v978 = vlaneseq
    %v979 = vshrl.u32 %v978, 7
    %v980 = vadd.s32 %v979, 24
    %981 = vset.pattern.permute.xlu0 %v980
    %982 = vperm.xlu0 %981, %v959
    %v983 = vpop.permute.xlu0 %982
    %v984 = vperm.slane %v793, 7
    %v985 = vlaneseq
    %v986 = vshrl.u32 %v985, 7
    %988 = vset.pattern.permute.xlu0 %v986
    %989 = vperm.xlu0 %988, %v984
    %v990 = vpop.permute.xlu0 %989
    %v991 = vlaneseq
    %v992 = vshrl.u32 %v991, 7
    %v993 = vadd.s32 %v992, 8
    %994 = vset.pattern.permute.xlu0 %v993
    %995 = vperm.xlu0 %994, %v984
    %v996 = vpop.permute.xlu0 %995
    %v997 = vlaneseq
    %v998 = vshrl.u32 %v997, 7
    %v999 = vadd.s32 %v998, 16
    %1000 = vset.pattern.permute.xlu0 %v999
    %1001 = vperm.xlu0 %1000, %v984
    %v1002 = vpop.permute.xlu0 %1001
    %v1003 = vlaneseq
    %v1004 = vshrl.u32 %v1003, 7
    %v1005 = vadd.s32 %v1004, 24
    %1006 = vset.pattern.permute.xlu0 %v1005
    %1007 = vperm.xlu0 %1006, %v984
    %v1008 = vpop.permute.xlu0 %1007
    %v1009 = vperm.slane %v808, 0
    %v1010 = vlaneseq
    %v1011 = vshrl.u32 %v1010, 7
    %1013 = vset.pattern.permute.xlu0 %v1011
    %1014 = vperm.xlu0 %1013, %v1009
    %v1015 = vpop.permute.xlu0 %1014
    %v1016 = vlaneseq
    %v1017 = vshrl.u32 %v1016, 7
    %v1018 = vadd.s32 %v1017, 8
    %1019 = vset.pattern.permute.xlu0 %v1018
    %1020 = vperm.xlu0 %1019, %v1009
    %v1021 = vpop.permute.xlu0 %1020
    %v1022 = vlaneseq
    %v1023 = vshrl.u32 %v1022, 7
    %v1024 = vadd.s32 %v1023, 16
    %1025 = vset.pattern.permute.xlu0 %v1024
    %1026 = vperm.xlu0 %1025, %v1009
    %v1027 = vpop.permute.xlu0 %1026
    %v1028 = vlaneseq
    %v1029 = vshrl.u32 %v1028, 7
    %v1030 = vadd.s32 %v1029, 24
    %1031 = vset.pattern.permute.xlu0 %v1030
    %1032 = vperm.xlu0 %1031, %v1009
    %v1033 = vpop.permute.xlu0 %1032
    %v1034 = vperm.slane %v808, 1
    %v1035 = vlaneseq
    %v1036 = vshrl.u32 %v1035, 7
    %1038 = vset.pattern.permute.xlu0 %v1036
    %1039 = vperm.xlu0 %1038, %v1034
    %v1040 = vpop.permute.xlu0 %1039
    %v1041 = vlaneseq
    %v1042 = vshrl.u32 %v1041, 7
    %v1043 = vadd.s32 %v1042, 8
    %1044 = vset.pattern.permute.xlu0 %v1043
    %1045 = vperm.xlu0 %1044, %v1034
    %v1046 = vpop.permute.xlu0 %1045
    %v1047 = vlaneseq
    %v1048 = vshrl.u32 %v1047, 7
    %v1049 = vadd.s32 %v1048, 16
    %1050 = vset.pattern.permute.xlu0 %v1049
    %1051 = vperm.xlu0 %1050, %v1034
    %v1052 = vpop.permute.xlu0 %1051
    %v1053 = vlaneseq
    %v1054 = vshrl.u32 %v1053, 7
    %v1055 = vadd.s32 %v1054, 24
    %1056 = vset.pattern.permute.xlu0 %v1055
    %1057 = vperm.xlu0 %1056, %v1034
    %v1058 = vpop.permute.xlu0 %1057
    %v1059 = vperm.slane %v808, 2
    %v1060 = vlaneseq
    %v1061 = vshrl.u32 %v1060, 7
    %1063 = vset.pattern.permute.xlu0 %v1061
    %1064 = vperm.xlu0 %1063, %v1059
    %v1065 = vpop.permute.xlu0 %1064
    %v1066 = vlaneseq
    %v1067 = vshrl.u32 %v1066, 7
    %v1068 = vadd.s32 %v1067, 8
    %1069 = vset.pattern.permute.xlu0 %v1068
    %1070 = vperm.xlu0 %1069, %v1059
    %v1071 = vpop.permute.xlu0 %1070
    %v1072 = vlaneseq
    %v1073 = vshrl.u32 %v1072, 7
    %v1074 = vadd.s32 %v1073, 16
    %1075 = vset.pattern.permute.xlu0 %v1074
    %1076 = vperm.xlu0 %1075, %v1059
    %v1077 = vpop.permute.xlu0 %1076
    %v1078 = vlaneseq
    %v1079 = vshrl.u32 %v1078, 7
    %v1080 = vadd.s32 %v1079, 24
    %1081 = vset.pattern.permute.xlu0 %v1080
    %1082 = vperm.xlu0 %1081, %v1059
    %v1083 = vpop.permute.xlu0 %1082
    %v1084 = vperm.slane %v808, 3
    %v1085 = vlaneseq
    %v1086 = vshrl.u32 %v1085, 7
    %1088 = vset.pattern.permute.xlu0 %v1086
    %1089 = vperm.xlu0 %1088, %v1084
    %v1090 = vpop.permute.xlu0 %1089
    %v1091 = vlaneseq
    %v1092 = vshrl.u32 %v1091, 7
    %v1093 = vadd.s32 %v1092, 8
    %1094 = vset.pattern.permute.xlu0 %v1093
    %1095 = vperm.xlu0 %1094, %v1084
    %v1096 = vpop.permute.xlu0 %1095
    %v1097 = vlaneseq
    %v1098 = vshrl.u32 %v1097, 7
    %v1099 = vadd.s32 %v1098, 16
    %1100 = vset.pattern.permute.xlu0 %v1099
    %1101 = vperm.xlu0 %1100, %v1084
    %v1102 = vpop.permute.xlu0 %1101
    %v1103 = vlaneseq
    %v1104 = vshrl.u32 %v1103, 7
    %v1105 = vadd.s32 %v1104, 24
    %1106 = vset.pattern.permute.xlu0 %v1105
    %1107 = vperm.xlu0 %1106, %v1084
    %v1108 = vpop.permute.xlu0 %1107
    %v1109 = vperm.slane %v808, 4
    %v1110 = vlaneseq
    %v1111 = vshrl.u32 %v1110, 7
    %1113 = vset.pattern.permute.xlu0 %v1111
    %1114 = vperm.xlu0 %1113, %v1109
    %v1115 = vpop.permute.xlu0 %1114
    %v1116 = vlaneseq
    %v1117 = vshrl.u32 %v1116, 7
    %v1118 = vadd.s32 %v1117, 8
    %1119 = vset.pattern.permute.xlu0 %v1118
    %1120 = vperm.xlu0 %1119, %v1109
    %v1121 = vpop.permute.xlu0 %1120
    %v1122 = vlaneseq
    %v1123 = vshrl.u32 %v1122, 7
    %v1124 = vadd.s32 %v1123, 16
    %1125 = vset.pattern.permute.xlu0 %v1124
    %1126 = vperm.xlu0 %1125, %v1109
    %v1127 = vpop.permute.xlu0 %1126
    %v1128 = vlaneseq
    %v1129 = vshrl.u32 %v1128, 7
    %v1130 = vadd.s32 %v1129, 24
    %1131 = vset.pattern.permute.xlu0 %v1130
    %1132 = vperm.xlu0 %1131, %v1109
    %v1133 = vpop.permute.xlu0 %1132
    %v1134 = vperm.slane %v808, 5
    %v1135 = vlaneseq
    %v1136 = vshrl.u32 %v1135, 7
    %1138 = vset.pattern.permute.xlu0 %v1136
    %1139 = vperm.xlu0 %1138, %v1134
    %v1140 = vpop.permute.xlu0 %1139
    %v1141 = vlaneseq
    %v1142 = vshrl.u32 %v1141, 7
    %v1143 = vadd.s32 %v1142, 8
    %1144 = vset.pattern.permute.xlu0 %v1143
    %1145 = vperm.xlu0 %1144, %v1134
    %v1146 = vpop.permute.xlu0 %1145
    %v1147 = vlaneseq
    %v1148 = vshrl.u32 %v1147, 7
    %v1149 = vadd.s32 %v1148, 16
    %1150 = vset.pattern.permute.xlu0 %v1149
    %1151 = vperm.xlu0 %1150, %v1134
    %v1152 = vpop.permute.xlu0 %1151
    %v1153 = vlaneseq
    %v1154 = vshrl.u32 %v1153, 7
    %v1155 = vadd.s32 %v1154, 24
    %1156 = vset.pattern.permute.xlu0 %v1155
    %1157 = vperm.xlu0 %1156, %v1134
    %v1158 = vpop.permute.xlu0 %1157
    %v1159 = vperm.slane %v808, 6
    %v1160 = vlaneseq
    %v1161 = vshrl.u32 %v1160, 7
    %1163 = vset.pattern.permute.xlu0 %v1161
    %1164 = vperm.xlu0 %1163, %v1159
    %v1165 = vpop.permute.xlu0 %1164
    %v1166 = vlaneseq
    %v1167 = vshrl.u32 %v1166, 7
    %v1168 = vadd.s32 %v1167, 8
    %1169 = vset.pattern.permute.xlu0 %v1168
    %1170 = vperm.xlu0 %1169, %v1159
    %v1171 = vpop.permute.xlu0 %1170
    %v1172 = vlaneseq
    %v1173 = vshrl.u32 %v1172, 7
    %v1174 = vadd.s32 %v1173, 16
    %1175 = vset.pattern.permute.xlu0 %v1174
    %1176 = vperm.xlu0 %1175, %v1159
    %v1177 = vpop.permute.xlu0 %1176
    %v1178 = vlaneseq
    %v1179 = vshrl.u32 %v1178, 7
    %v1180 = vadd.s32 %v1179, 24
    %1181 = vset.pattern.permute.xlu0 %v1180
    %1182 = vperm.xlu0 %1181, %v1159
    %v1183 = vpop.permute.xlu0 %1182
    %v1184 = vperm.slane %v808, 7
    %v1185 = vlaneseq
    %v1186 = vshrl.u32 %v1185, 7
    %1188 = vset.pattern.permute.xlu0 %v1186
    %1189 = vperm.xlu0 %1188, %v1184
    %v1190 = vpop.permute.xlu0 %1189
    %v1191 = vlaneseq
    %v1192 = vshrl.u32 %v1191, 7
    %v1193 = vadd.s32 %v1192, 8
    %1194 = vset.pattern.permute.xlu0 %v1193
    %1195 = vperm.xlu0 %1194, %v1184
    %v1196 = vpop.permute.xlu0 %1195
    %v1197 = vlaneseq
    %v1198 = vshrl.u32 %v1197, 7
    %v1199 = vadd.s32 %v1198, 16
    %1200 = vset.pattern.permute.xlu0 %v1199
    %1201 = vperm.xlu0 %1200, %v1184
    %v1202 = vpop.permute.xlu0 %1201
    %v1203 = vlaneseq
    %v1204 = vshrl.u32 %v1203, 7
    %v1205 = vadd.s32 %v1204, 24
    %1206 = vset.pattern.permute.xlu0 %v1205
    %1207 = vperm.xlu0 %1206, %v1184
    %v1208 = vpop.permute.xlu0 %1207
    %v1209 = vmul.f32 %v31, %v815
    %v1210 = vmul.f32 %v32, %v815
    %v1211 = vmul.f32 %v33, %v821
    %v1212 = vmul.f32 %v34, %v821
    %v1213 = vmul.f32 %v35, %v827
    %v1214 = vmul.f32 %v36, %v827
    %v1215 = vmul.f32 %v37, %v833
    %v1216 = vmul.f32 %v38, %v833
    %v1217 = vmul.f32 %v39, %v840
    %v1218 = vmul.f32 %v40, %v840
    %v1219 = vmul.f32 %v41, %v846
    %v1220 = vmul.f32 %v42, %v846
    %v1221 = vmul.f32 %v43, %v852
    %v1222 = vmul.f32 %v44, %v852
    %v1223 = vmul.f32 %v45, %v858
    %v1224 = vmul.f32 %v46, %v858
    %v1225 = vmul.f32 %v47, %v865
    %v1226 = vmul.f32 %v48, %v865
    %v1227 = vmul.f32 %v49, %v871
    %v1228 = vmul.f32 %v50, %v871
    %v1229 = vmul.f32 %v51, %v877
    %v1230 = vmul.f32 %v52, %v877
    %v1231 = vmul.f32 %v53, %v883
    %v1232 = vmul.f32 %v54, %v883
    %v1233 = vmul.f32 %v55, %v890
    %v1234 = vmul.f32 %v56, %v890
    %v1235 = vmul.f32 %v57, %v896
    %v1236 = vmul.f32 %v58, %v896
    %v1237 = vmul.f32 %v59, %v902
    %v1238 = vmul.f32 %v60, %v902
    %v1239 = vmul.f32 %v61, %v908
    %v1240 = vmul.f32 %v62, %v908
    %v1241 = vmul.f32 %v63, %v915
    %v1242 = vmul.f32 %v64, %v915
    %v1243 = vmul.f32 %v65, %v921
    %v1244 = vmul.f32 %v66, %v921
    %v1245 = vmul.f32 %v67, %v927
    %v1246 = vmul.f32 %v68, %v927
    %v1247 = vmul.f32 %v69, %v933
    %v1248 = vmul.f32 %v70, %v933
    %v1249 = vmul.f32 %v71, %v940
    %v1250 = vmul.f32 %v72, %v940
    %v1251 = vmul.f32 %v73, %v946
    %v1252 = vmul.f32 %v74, %v946
    %v1253 = vmul.f32 %v75, %v952
    %v1254 = vmul.f32 %v76, %v952
    %v1255 = vmul.f32 %v77, %v958
    %v1256 = vmul.f32 %v78, %v958
    %v1257 = vmul.f32 %v79, %v965
    %v1258 = vmul.f32 %v80, %v965
    %v1259 = vmul.f32 %v81, %v971
    %v1260 = vmul.f32 %v82, %v971
    %v1261 = vmul.f32 %v83, %v977
    %v1262 = vmul.f32 %v84, %v977
    %v1263 = vmul.f32 %v85, %v983
    %v1264 = vmul.f32 %v86, %v983
    %v1265 = vmul.f32 %v87, %v990
    %v1266 = vmul.f32 %v88, %v990
    %v1267 = vmul.f32 %v89, %v996
    %v1268 = vmul.f32 %v90, %v996
    %v1269 = vmul.f32 %v91, %v1002
    %v1270 = vmul.f32 %v92, %v1002
    %v1271 = vmul.f32 %v93, %v1008
    %v1272 = vmul.f32 %v94, %v1008
    %v1273 = vmul.f32 %v95, %v1015
    %v1274 = vmul.f32 %v96, %v1015
    %v1275 = vmul.f32 %v97, %v1021
    %v1276 = vmul.f32 %v98, %v1021
    %v1277 = vmul.f32 %v99, %v1027
    %v1278 = vmul.f32 %v100, %v1027
    %v1279 = vmul.f32 %v101, %v1033
    %v1280 = vmul.f32 %v102, %v1033
    %v1281 = vmul.f32 %v103, %v1040
    %v1282 = vmul.f32 %v104, %v1040
    %v1283 = vmul.f32 %v105, %v1046
    %v1284 = vmul.f32 %v106, %v1046
    %v1285 = vmul.f32 %v107, %v1052
    %v1286 = vmul.f32 %v108, %v1052
    %v1287 = vmul.f32 %v109, %v1058
    %v1288 = vmul.f32 %v110, %v1058
    %v1289 = vmul.f32 %v111, %v1065
    %v1290 = vmul.f32 %v112, %v1065
    %v1291 = vmul.f32 %v113, %v1071
    %v1292 = vmul.f32 %v114, %v1071
    %v1293 = vmul.f32 %v115, %v1077
    %v1294 = vmul.f32 %v116, %v1077
    %v1295 = vmul.f32 %v117, %v1083
    %v1296 = vmul.f32 %v118, %v1083
    %v1297 = vmul.f32 %v119, %v1090
    %v1298 = vmul.f32 %v120, %v1090
    %v1299 = vmul.f32 %v121, %v1096
    %v1300 = vmul.f32 %v122, %v1096
    %v1301 = vmul.f32 %v123, %v1102
    %v1302 = vmul.f32 %v124, %v1102
    %v1303 = vmul.f32 %v125, %v1108
    %v1304 = vmul.f32 %v126, %v1108
    %v1305 = vmul.f32 %v127, %v1115
    %v1306 = vmul.f32 %v128, %v1115
    %v1307 = vmul.f32 %v129, %v1121
    %v1308 = vmul.f32 %v130, %v1121
    %v1309 = vmul.f32 %v131, %v1127
    %v1310 = vmul.f32 %v132, %v1127
    %v1311 = vmul.f32 %v133, %v1133
    %v1312 = vmul.f32 %v134, %v1133
    %v1313 = vmul.f32 %v135, %v1140
    %v1314 = vmul.f32 %v136, %v1140
    %v1315 = vmul.f32 %v137, %v1146
    %v1316 = vmul.f32 %v138, %v1146
    %v1317 = vmul.f32 %v139, %v1152
    %v1318 = vmul.f32 %v140, %v1152
    %v1319 = vmul.f32 %v141, %v1158
    %v1320 = vmul.f32 %v142, %v1158
    %v1321 = vmul.f32 %v143, %v1165
    %v1322 = vmul.f32 %v144, %v1165
    %v1323 = vmul.f32 %v145, %v1171
    %v1324 = vmul.f32 %v146, %v1171
    %v1325 = vmul.f32 %v147, %v1177
    %v1326 = vmul.f32 %v148, %v1177
    %v1327 = vmul.f32 %v149, %v1183
    %v1328 = vmul.f32 %v150, %v1183
    %v1329 = vmul.f32 %v151, %v1190
    %v1330 = vmul.f32 %v152, %v1190
    %v1331 = vmul.f32 %v153, %v1196
    %v1332 = vmul.f32 %v154, %v1196
    %v1333 = vmul.f32 %v155, %v1202
    %v1334 = vmul.f32 %v156, %v1202
    %v1335 = vmul.f32 %v157, %v1208
    %v1336 = vmul.f32 %v158, %v1208
    %1337 = vst [vmem:[#allocation5] sm:$0xff] %v1209
    %1338 = vst [vmem:[#allocation5 + $0x8] sm:$0xff] %v1210
    %1339 = vst [vmem:[#allocation5 + $0x10] sm:$0xff] %v1211
    %1340 = vst [vmem:[#allocation5 + $0x18] sm:$0xff] %v1212
    %1341 = vst [vmem:[#allocation5 + $0x20] sm:$0xff] %v1213
    %1342 = vst [vmem:[#allocation5 + $0x28] sm:$0xff] %v1214
    %1343 = vst [vmem:[#allocation5 + $0x30] sm:$0xff] %v1215
    %1344 = vst [vmem:[#allocation5 + $0x38] sm:$0xff] %v1216
    %1345 = vst [vmem:[#allocation5 + $0x40] sm:$0xff] %v1217
    %1346 = vst [vmem:[#allocation5 + $0x48] sm:$0xff] %v1218
    %1347 = vst [vmem:[#allocation5 + $0x50] sm:$0xff] %v1219
    %1348 = vst [vmem:[#allocation5 + $0x58] sm:$0xff] %v1220
    %1349 = vst [vmem:[#allocation5 + $0x60] sm:$0xff] %v1221
    %1350 = vst [vmem:[#allocation5 + $0x68] sm:$0xff] %v1222
    %1351 = vst [vmem:[#allocation5 + $0x70] sm:$0xff] %v1223
    %1352 = vst [vmem:[#allocation5 + $0x78] sm:$0xff] %v1224
    %1353 = vst [vmem:[#allocation5 + $0x80] sm:$0xff] %v1225
    %1354 = vst [vmem:[#allocation5 + $0x88] sm:$0xff] %v1226
    %1355 = vst [vmem:[#allocation5 + $0x90] sm:$0xff] %v1227
    %1356 = vst [vmem:[#allocation5 + $0x98] sm:$0xff] %v1228
    %1357 = vst [vmem:[#allocation5 + $0xa0] sm:$0xff] %v1229
    %1358 = vst [vmem:[#allocation5 + $0xa8] sm:$0xff] %v1230
    %1359 = vst [vmem:[#allocation5 + $0xb0] sm:$0xff] %v1231
    %1360 = vst [vmem:[#allocation5 + $0xb8] sm:$0xff] %v1232
    %1361 = vst [vmem:[#allocation5 + $0xc0] sm:$0xff] %v1233
    %1362 = vst [vmem:[#allocation5 + $0xc8] sm:$0xff] %v1234
    %1363 = vst [vmem:[#allocation5 + $0xd0] sm:$0xff] %v1235
    %1364 = vst [vmem:[#allocation5 + $0xd8] sm:$0xff] %v1236
    %1365 = vst [vmem:[#allocation5 + $0xe0] sm:$0xff] %v1237
    %1366 = vst [vmem:[#allocation5 + $0xe8] sm:$0xff] %v1238
    %1367 = vst [vmem:[#allocation5 + $0xf0] sm:$0xff] %v1239
    %1368 = vst [vmem:[#allocation5 + $0xf8] sm:$0xff] %v1240
    %1369 = vst [vmem:[#allocation5 + $0x100] sm:$0xff] %v1241
    %1370 = vst [vmem:[#allocation5 + $0x108] sm:$0xff] %v1242
    %1371 = vst [vmem:[#allocation5 + $0x110] sm:$0xff] %v1243
    %1372 = vst [vmem:[#allocation5 + $0x118] sm:$0xff] %v1244
    %1373 = vst [vmem:[#allocation5 + $0x120] sm:$0xff] %v1245
    %1374 = vst [vmem:[#allocation5 + $0x128] sm:$0xff] %v1246
    %1375 = vst [vmem:[#allocation5 + $0x130] sm:$0xff] %v1247
    %1376 = vst [vmem:[#allocation5 + $0x138] sm:$0xff] %v1248
    %1377 = vst [vmem:[#allocation5 + $0x140] sm:$0xff] %v1249
    %1378 = vst [vmem:[#allocation5 + $0x148] sm:$0xff] %v1250
    %1379 = vst [vmem:[#allocation5 + $0x150] sm:$0xff] %v1251
    %1380 = vst [vmem:[#allocation5 + $0x158] sm:$0xff] %v1252
    %1381 = vst [vmem:[#allocation5 + $0x160] sm:$0xff] %v1253
    %1382 = vst [vmem:[#allocation5 + $0x168] sm:$0xff] %v1254
    %1383 = vst [vmem:[#allocation5 + $0x170] sm:$0xff] %v1255
    %1384 = vst [vmem:[#allocation5 + $0x178] sm:$0xff] %v1256
    %1385 = vst [vmem:[#allocation5 + $0x180] sm:$0xff] %v1257
    %1386 = vst [vmem:[#allocation5 + $0x188] sm:$0xff] %v1258
    %1387 = vst [vmem:[#allocation5 + $0x190] sm:$0xff] %v1259
    %1388 = vst [vmem:[#allocation5 + $0x198] sm:$0xff] %v1260
    %1389 = vst [vmem:[#allocation5 + $0x1a0] sm:$0xff] %v1261
    %1390 = vst [vmem:[#allocation5 + $0x1a8] sm:$0xff] %v1262
    %1391 = vst [vmem:[#allocation5 + $0x1b0] sm:$0xff] %v1263
    %1392 = vst [vmem:[#allocation5 + $0x1b8] sm:$0xff] %v1264
    %1393 = vst [vmem:[#allocation5 + $0x1c0] sm:$0xff] %v1265
    %1394 = vst [vmem:[#allocation5 + $0x1c8] sm:$0xff] %v1266
    %1395 = vst [vmem:[#allocation5 + $0x1d0] sm:$0xff] %v1267
    %1396 = vst [vmem:[#allocation5 + $0x1d8] sm:$0xff] %v1268
    %1397 = vst [vmem:[#allocation5 + $0x1e0] sm:$0xff] %v1269
    %1398 = vst [vmem:[#allocation5 + $0x1e8] sm:$0xff] %v1270
    %1399 = vst [vmem:[#allocation5 + $0x1f0] sm:$0xff] %v1271
    %1400 = vst [vmem:[#allocation5 + $0x1f8] sm:$0xff] %v1272
    %1401 = vst [vmem:[#allocation5 + $0x200] sm:$0xff] %v1273
    %1402 = vst [vmem:[#allocation5 + $0x208] sm:$0xff] %v1274
    %1403 = vst [vmem:[#allocation5 + $0x210] sm:$0xff] %v1275
    %1404 = vst [vmem:[#allocation5 + $0x218] sm:$0xff] %v1276
    %1405 = vst [vmem:[#allocation5 + $0x220] sm:$0xff] %v1277
    %1406 = vst [vmem:[#allocation5 + $0x228] sm:$0xff] %v1278
    %1407 = vst [vmem:[#allocation5 + $0x230] sm:$0xff] %v1279
    %1408 = vst [vmem:[#allocation5 + $0x238] sm:$0xff] %v1280
    %1409 = vst [vmem:[#allocation5 + $0x240] sm:$0xff] %v1281
    %1410 = vst [vmem:[#allocation5 + $0x248] sm:$0xff] %v1282
    %1411 = vst [vmem:[#allocation5 + $0x250] sm:$0xff] %v1283
    %1412 = vst [vmem:[#allocation5 + $0x258] sm:$0xff] %v1284
    %1413 = vst [vmem:[#allocation5 + $0x260] sm:$0xff] %v1285
    %1414 = vst [vmem:[#allocation5 + $0x268] sm:$0xff] %v1286
    %1415 = vst [vmem:[#allocation5 + $0x270] sm:$0xff] %v1287
    %1416 = vst [vmem:[#allocation5 + $0x278] sm:$0xff] %v1288
    %1417 = vst [vmem:[#allocation5 + $0x280] sm:$0xff] %v1289
    %1418 = vst [vmem:[#allocation5 + $0x288] sm:$0xff] %v1290
    %1419 = vst [vmem:[#allocation5 + $0x290] sm:$0xff] %v1291
    %1420 = vst [vmem:[#allocation5 + $0x298] sm:$0xff] %v1292
    %1421 = vst [vmem:[#allocation5 + $0x2a0] sm:$0xff] %v1293
    %1422 = vst [vmem:[#allocation5 + $0x2a8] sm:$0xff] %v1294
    %1423 = vst [vmem:[#allocation5 + $0x2b0] sm:$0xff] %v1295
    %1424 = vst [vmem:[#allocation5 + $0x2b8] sm:$0xff] %v1296
    %1425 = vst [vmem:[#allocation5 + $0x2c0] sm:$0xff] %v1297
    %1426 = vst [vmem:[#allocation5 + $0x2c8] sm:$0xff] %v1298
    %1427 = vst [vmem:[#allocation5 + $0x2d0] sm:$0xff] %v1299
    %1428 = vst [vmem:[#allocation5 + $0x2d8] sm:$0xff] %v1300
    %1429 = vst [vmem:[#allocation5 + $0x2e0] sm:$0xff] %v1301
    %1430 = vst [vmem:[#allocation5 + $0x2e8] sm:$0xff] %v1302
    %1431 = vst [vmem:[#allocation5 + $0x2f0] sm:$0xff] %v1303
    %1432 = vst [vmem:[#allocation5 + $0x2f8] sm:$0xff] %v1304
    %1433 = vst [vmem:[#allocation5 + $0x300] sm:$0xff] %v1305
    %1434 = vst [vmem:[#allocation5 + $0x308] sm:$0xff] %v1306
    %1435 = vst [vmem:[#allocation5 + $0x310] sm:$0xff] %v1307
    %1436 = vst [vmem:[#allocation5 + $0x318] sm:$0xff] %v1308
    %1437 = vst [vmem:[#allocation5 + $0x320] sm:$0xff] %v1309
    %1438 = vst [vmem:[#allocation5 + $0x328] sm:$0xff] %v1310
    %1439 = vst [vmem:[#allocation5 + $0x330] sm:$0xff] %v1311
    %1440 = vst [vmem:[#allocation5 + $0x338] sm:$0xff] %v1312
    %1441 = vst [vmem:[#allocation5 + $0x340] sm:$0xff] %v1313
    %1442 = vst [vmem:[#allocation5 + $0x348] sm:$0xff] %v1314
    %1443 = vst [vmem:[#allocation5 + $0x350] sm:$0xff] %v1315
    %1444 = vst [vmem:[#allocation5 + $0x358] sm:$0xff] %v1316
    %1445 = vst [vmem:[#allocation5 + $0x360] sm:$0xff] %v1317
    %1446 = vst [vmem:[#allocation5 + $0x368] sm:$0xff] %v1318
    %1447 = vst [vmem:[#allocation5 + $0x370] sm:$0xff] %v1319
    %1448 = vst [vmem:[#allocation5 + $0x378] sm:$0xff] %v1320
    %1449 = vst [vmem:[#allocation5 + $0x380] sm:$0xff] %v1321
    %1450 = vst [vmem:[#allocation5 + $0x388] sm:$0xff] %v1322
    %1451 = vst [vmem:[#allocation5 + $0x390] sm:$0xff] %v1323
    %1452 = vst [vmem:[#allocation5 + $0x398] sm:$0xff] %v1324
    %1453 = vst [vmem:[#allocation5 + $0x3a0] sm:$0xff] %v1325
    %1454 = vst [vmem:[#allocation5 + $0x3a8] sm:$0xff] %v1326
    %1455 = vst [vmem:[#allocation5 + $0x3b0] sm:$0xff] %v1327
    %1456 = vst [vmem:[#allocation5 + $0x3b8] sm:$0xff] %v1328
    %1457 = vst [vmem:[#allocation5 + $0x3c0] sm:$0xff] %v1329
    %1458 = vst [vmem:[#allocation5 + $0x3c8] sm:$0xff] %v1330
    %1459 = vst [vmem:[#allocation5 + $0x3d0] sm:$0xff] %v1331
    %1460 = vst [vmem:[#allocation5 + $0x3d8] sm:$0xff] %v1332
    %1461 = vst [vmem:[#allocation5 + $0x3e0] sm:$0xff] %v1333
    %1462 = vst [vmem:[#allocation5 + $0x3e8] sm:$0xff] %v1334
    %1463 = vst [vmem:[#allocation5 + $0x3f0] sm:$0xff] %v1335
    %1464 = vst [vmem:[#allocation5 + $0x3f8] sm:$0xff] %v1336
    // Predicated region
    $region18: #{tpu_custom_call.1} parent=1 // pred_check
      _
    $region19: #{tpu_custom_call.1} parent=1 // pred_check_branch
      %1466 = sbr.rel (0) target = $region21
    $region20: #{tpu_custom_call.1} parent=1 // pred_region
      %1468 = vsyncadd [#allocation4], 0
      %s1469 = sshll.u32 [#allocation5], 4
      %s1470 = int_to_ptr.vmem [resolvable:$true] %s1469
      %s1471 = sshll.u32 %s3, 4
      %s1472 = int_to_ptr.hbm [resolvable:$true] %s1471
      %1477 = dma.vmem_to_hbm [thread:$0]  %s1470, 16384, %s1472, [#allocation4], 256, 256, 16
    $region21: #{tpu_custom_call.1} parent=1 // pred_fallthru
      _
    // Predicated region
    $region22: #{tpu_custom_call.1} parent=1 // pred_check
      _
    $region23: #{tpu_custom_call.1} parent=1 // pred_check_branch
      %1479 = sbr.rel (0) target = $region25
    $region24: #{tpu_custom_call.1} parent=1 // pred_region
      %1481 = dma.done [#allocation4], 16384
    $region25: #{tpu_custom_call.1} parent=1 // pred_fallthru
      _
    %1482 = vsyncpa [#allocation3], 1
    %1483 = vsyncpa [#allocation4], 1

</llo_original>
